<compile_context>
chip_gen: v5e
topology: v5e:2x2
jax: 0.10.0
libtpu: 0.0.40
codegen_flags: <defaults>
</compile_context>

<pallas_src>
import numpy as np
import jax
import jax.numpy as jnp
from jax import lax
from jax.experimental import pallas as pl
from jax.experimental.pallas import tpu as pltpu

# ----------------------------- constants -------------------------------------
AUDIO_IN_DIM = 29            # 'deepspeech'
AUDIO_DIM    = 32
SEQ_LEN      = 8
WIN_SIZE     = 16
BOUND        = 0.15
EMBED_DIM    = 32            # embedding_gs = True
NUM_LEVELS   = 12
LEVEL_DIM    = 1
BASE_RES     = 16
DESIRED_RES  = 256 * BOUND
IN_DIM       = 3 * NUM_LEVELS * LEVEL_DIM + EMBED_DIM   # 12+12+12+32 = 68
EXP_IN_DIM   = 5             # 'au': 6 - 1
EYE_DIM      = 6
HIDDEN_DIM   = 64
OUT_DIM      = 11

AUD_HID  = 32                # aud_ch_att_net hidden width
EYE_HID  = 16                # eye_att_net hidden width
AE_HID   = AUD_HID + EYE_HID           # 48 : fused hidden of both att nets
AE_OUT   = AUDIO_DIM + EYE_DIM         # 38 : [aud | eye]
FUSED_L1 = AUD_HID + EYE_HID + HIDDEN_DIM   # 112 : fused first-layer width
PACK_DIM = 16                # packed output: h(11) | amb_aud | amb_eye | pad(3)
MAX_TILE = 2048


def _pick_tile(n, max_tile=MAX_TILE):
    """Largest 128-multiple tile <= max_tile that still gives >=2 grid steps
    (v7x has 2 TensorCores sharded over the 'parallel' grid axis)."""
    half = (((n + 1) // 2) // 128) * 128
    return int(max(128, min(max_tile, half)))


# ----------------------------- Pallas kernel ---------------------------------
def motion_head_kernel(x_ref, wl1_ref, wl2_ref, wwe_ref, ws2_ref, ws3_ref, o_ref):
    x = x_ref[...]                                               # (TN, 68) bf16

    # fused first layers: [aud_w1 | eye_w1 | sig_w1x]  -> (TN, 112) f32
    t = jnp.dot(x, wl1_ref[...], preferred_element_type=jnp.float32)
    ae1 = jnp.maximum(t[:, :AE_HID], 0.0)                        # relu'd aud/eye hidden
    h1x = t[:, AE_HID:]                                          # (TN, 64) sigma pre-act

    # fused second layers of both attention nets (block-diag (48,38) weight)
    r = jnp.dot(ae1.astype(jnp.bfloat16), wl2_ref[...],
                preferred_element_type=jnp.float32)              # (TN, 38): [aud | eye_pre]
    lane = lax.broadcasted_iota(jnp.int32, r.shape, 1)
    ae = jnp.where(lane < AUDIO_DIM, r, jnp.maximum(r, 0.0))     # aud (no relu) | eye (relu)

    sq = ae * ae
    amb_aud = jnp.sqrt(jnp.sum(sq[:, :AUDIO_DIM], axis=-1, keepdims=True))
    amb_eye = jnp.sqrt(jnp.sum(sq[:, AUDIO_DIM:], axis=-1, keepdims=True))

    # sigma_net (enc_a / enc_e gating already folded into wwe in the wrapper)
    h1 = jnp.maximum(h1x + jnp.dot(ae.astype(jnp.bfloat16), wwe_ref[...],
                                   preferred_element_type=jnp.float32), 0.0)
    h2 = jnp.maximum(jnp.dot(h1.astype(jnp.bfloat16), ws2_ref[...],
                             preferred_element_type=jnp.float32), 0.0)
    h3 = jnp.dot(h2.astype(jnp.bfloat16), ws3_ref[...],
                 preferred_element_type=jnp.float32)             # (TN, 16), cols 11..15 == 0

    lane16 = lax.broadcasted_iota(jnp.int32, h3.shape, 1)
    o_ref[...] = jnp.where(lane16 == OUT_DIM, amb_aud,
                           jnp.where(lane16 == OUT_DIM + 1, amb_eye, h3))


def prep_head_weights(p, enc_a, enc_e_vec):
    # fused first layer: [aud_w1 | eye_w1 | sig_w1x]  -> (68, 112)
    w_l1 = jnp.concatenate([p['aud_w1'], p['eye_w1'], p['sig_w1x']], axis=1)
    # block-diagonal second layer of the two attention nets -> (48, 38)
    w_l2 = jnp.zeros((AE_HID, AE_OUT), jnp.float32)
    w_l2 = w_l2.at[:AUD_HID, :AUDIO_DIM].set(p['aud_w2'])
    w_l2 = w_l2.at[AUD_HID:, AUDIO_DIM:].set(p['eye_w2'])
    # fold the per-call enc_a / enc_e gating into sigma_net's first layer  (38, 64)
    w_we = jnp.concatenate([enc_a[0][:, None] * p['sig_w1w'],
                            enc_e_vec[:, None] * p['sig_w1e']], axis=0)
    # pad sigma_net's last layer to the 16-wide packed output  (64, 16)
    w_l5 = jnp.pad(p['sig_w3'], ((0, 0), (0, PACK_DIM - OUT_DIM)))
    bf = lambda w: w.astype(jnp.bfloat16)
    return bf(w_l1), bf(w_l2), bf(w_we), bf(p['sig_w2']), bf(w_l5)


def motion_head_pallas(enc_x, enc_a, enc_e_vec, p, *, max_tile=MAX_TILE):
    N = enc_x.shape[0]
    tile = _pick_tile(N, max_tile)
    grid = (pl.cdiv(N, tile),)

    xb = enc_x.astype(jnp.bfloat16)              # halve the dominant HBM stream
    weights = prep_head_weights(p, enc_a, enc_e_vec)

    out = pl.pallas_call(
        motion_head_kernel,
        out_shape=jax.ShapeDtypeStruct((N, PACK_DIM), jnp.float32),
        grid=grid,
        in_specs=[pl.BlockSpec((tile, IN_DIM), lambda i: (i, 0))] +
                 [pl.BlockSpec(w.shape, lambda i: (0, 0)) for w in weights],
        out_specs=pl.BlockSpec((tile, PACK_DIM), lambda i: (i, 0)),
        compiler_params=pltpu.CompilerParams(dimension_semantics=("parallel",)),
    )(xb, *weights)

    return (out[:, :OUT_DIM],
            out[:, OUT_DIM:OUT_DIM + 1],
            out[:, OUT_DIM + 1:OUT_DIM + 2])


# ----------------------------- plain-JAX glue ---------------------------------
def leaky(x, slope=0.02):
    return jnp.where(x >= 0, x, slope * x)


def conv1d(x, w, b, stride):
    # x: (N, C, L), w: (O, I, K=3), padding=1  (matches nn.Conv1d(..., padding=1))
    y = lax.conv_general_dilated(x, w, (stride,), [(1, 1)],
                                 dimension_numbers=('NCH', 'OIH', 'NCH'))
    return y + b[None, :, None]


def encode_audio(p, a):
    """AudioNet + AudioAttNet.  a: (SEQ_LEN, 29, 16).  Returns (1, 32)."""
    half = WIN_SIZE // 2
    x = a[:, :, 8 - half:8 + half]                              # (8, 29, 16)
    x = leaky(conv1d(x, p['an_c1_w'], p['an_c1_b'], 2))         # (8, 32, 8)
    x = leaky(conv1d(x, p['an_c2_w'], p['an_c2_b'], 2))         # (8, 32, 4)
    x = leaky(conv1d(x, p['an_c3_w'], p['an_c3_b'], 2))         # (8, 64, 2)
    x = leaky(conv1d(x, p['an_c4_w'], p['an_c4_b'], 2))         # (8, 64, 1)
    x = x[:, :, 0]                                              # (8, 64)
    x = leaky(x @ p['an_fc1_w'] + p['an_fc1_b'])
    x = x @ p['an_fc2_w'] + p['an_fc2_b']                       # (8, 32) per-frame

    # AudioAttNet on (1, 8, 32)
    y = x.T[None]                                               # (1, 32, 8)
    y = leaky(conv1d(y, p['aa_c1_w'], p['aa_c1_b'], 1))
    y = leaky(conv1d(y, p['aa_c2_w'], p['aa_c2_b'], 1))
    y = leaky(conv1d(y, p['aa_c3_w'], p['aa_c3_b'], 1))
    y = leaky(conv1d(y, p['aa_c4_w'], p['aa_c4_b'], 1))
    y = leaky(conv1d(y, p['aa_c5_w'], p['aa_c5_b'], 1))         # (1, 1, 8)
    y = y.reshape(1, SEQ_LEN)
    att = jax.nn.softmax(y @ p['aa_fc_w'] + p['aa_fc_b'], axis=1)   # (1, 8)
    return jnp.sum(att[0][:, None] * x, axis=0, keepdims=True)      # (1, 32)


def make_hashgrid_meta():
    # TODO(synk): replicates torch-ngp GridEncoder semantics approximately
    # (all levels are dense at this resolution so no spatial hashing is needed).
    scale = np.exp2(np.log2(DESIRED_RES / BASE_RES) / (NUM_LEVELS - 1))
    resolutions, offsets, off = [], [], 0
    for l in range(NUM_LEVELS):
        res = int(np.ceil(BASE_RES * (scale ** l)))
        resolutions.append(res)
        offsets.append(off)
        off += (res + 1) ** 2
    return resolutions, offsets, off


HG_RES, HG_OFF, HG_TOTAL = make_hashgrid_meta()


def hashgrid_encode(coords2d, table):
    """coords2d: (N, 2) in [-BOUND, BOUND]; table: (HG_TOTAL, LEVEL_DIM)."""
    # TODO(synk): longer term, fuse this gather into the Pallas kernel (each
    # plane's table is ~40 KB and fits VMEM) to avoid the enc_x HBM roundtrip.
    x01 = jnp.clip((coords2d + BOUND) / (2.0 * BOUND), 0.0, 1.0)
    feats = []
    for res, off in zip(HG_RES, HG_OFF):
        pos = x01 * res
        p0 = jnp.clip(jnp.floor(pos).astype(jnp.int32), 0, res - 1)
        w = pos - p0.astype(jnp.float32)
        px, py = p0[:, 0], p0[:, 1]
        wx, wy = w[:, :1], w[:, 1:2]
        stride = res + 1
        f00 = table[off + py * stride + px]
        f10 = table[off + py * stride + (px + 1)]
        f01 = table[off + (py + 1) * stride + px]
        f11 = table[off + (py + 1) * stride + (px + 1)]
        feats.append(f00 * (1 - wx) * (1 - wy) + f10 * wx * (1 - wy)
                     + f01 * (1 - wx) * wy + f11 * wx * wy)
    return jnp.concatenate(feats, axis=-1)                       # (N, 12)


def encode_x(p, x):
    xyz, embedding = x[:, :3], x[:, 3:]                          # embedding_gs=True
    xy = xyz[:, :2]
    yz = xyz[:, 1:3]
    xz = jnp.concatenate([xyz[:, :1], xyz[:, 2:3]], axis=-1)
    feat_xy = hashgrid_encode(xy, p['grid_xy'])
    feat_yz = hashgrid_encode(yz, p['grid_yz'])
    feat_xz = hashgrid_encode(xz, p['grid_xz'])
    return jnp.concatenate([feat_xy, feat_yz, feat_xz, embedding], axis=-1)


def motion_network_forward(p, x, a, e):
    enc_x = encode_x(p, x)                                       # (N, 68)
    enc_a = encode_audio(p, a)                                   # (1, 32)

    # exp_encode_net ('au'): MLP(5, 5, 16, 2) on e[:-1], concat e[-1:]
    eh = jnp.maximum(e[:EXP_IN_DIM] @ p['exp_w1'], 0.0)
    enc_e_core = eh @ p['exp_w2']
    enc_e_vec = jnp.concatenate([enc_e_core, e[EXP_IN_DIM:]], axis=-1)   # (6,)

    h, amb_aud, amb_eye = motion_head_pallas(enc_x, enc_a, enc_e_vec, p)
    return {
        'd_xyz':       h[:, :3] * 0.01,
        'd_rot':       h[:, 3:7],
        'd_opa':       h[:, 7:8],
        'd_scale':     h[:, 8:11],
        'ambient_aud': amb_aud,
        'ambient_eye': amb_eye,
    }, (enc_x, enc_a, enc_e_vec)


# plain-JAX f32 reference of the Pallas head (module semantics, unfused)
def motion_head_ref(enc_x, enc_a, enc_e_vec, p):
    aud = jnp.maximum(enc_x @ p['aud_w1'], 0.0) @ p['aud_w2']
    enc_w = enc_a * aud
    eye = jnp.maximum(jnp.maximum(enc_x @ p['eye_w1'], 0.0) @ p['eye_w2'], 0.0)
    enc_e = enc_e_vec[None, :] * eye
    W1 = jnp.concatenate([p['sig_w1x'], p['sig_w1w'], p['sig_w1e']], axis=0)
    h = jnp.concatenate([enc_x, enc_w, enc_e], axis=-1)
    h = jnp.maximum(h @ W1, 0.0)
    h = jnp.maximum(h @ p['sig_w2'], 0.0)
    h = h @ p['sig_w3']
    return (h,
            jnp.linalg.norm(aud, axis=-1, keepdims=True),
            jnp.linalg.norm(eye, axis=-1, keepdims=True))


# ----------------------------- parameter init ---------------------------------
def init_params(key):
    keys = iter(jax.random.split(key, 64))
    nrm = lambda shape, s=0.1: (s * jax.random.normal(next(keys), shape)
                                ).astype(jnp.float32)
    p = {}
    # hash-grid tables (torch-ngp inits uniform(-1e-4, 1e-4))
    for name in ('grid_xy', 'grid_yz', 'grid_xz'):
        p[name] = jax.random.uniform(next(keys), (HG_TOTAL, LEVEL_DIM),
                                     minval=-1e-4, maxval=1e-4,
                                     dtype=jnp.float32)
    # AudioNet
    p['an_c1_w'], p['an_c1_b'] = nrm((32, AUDIO_IN_DIM, 3)), nrm((32,))
    p['an_c2_w'], p['an_c2_b'] = nrm((32, 32, 3)), nrm((32,))
    p['an_c3_w'], p['an_c3_b'] = nrm((64, 32, 3)), nrm((64,))
    p['an_c4_w'], p['an_c4_b'] = nrm((64, 64, 3)), nrm((64,))
    p['an_fc1_w'], p['an_fc1_b'] = nrm((64, 64)), nrm((64,))
    p['an_fc2_w'], p['an_fc2_b'] = nrm((64, AUDIO_DIM)), nrm((AUDIO_DIM,))
    # AudioAttNet
    p['aa_c1_w'], p['aa_c1_b'] = nrm((16, AUDIO_DIM, 3)), nrm((16,))
    p['aa_c2_w'], p['aa_c2_b'] = nrm((8, 16, 3)), nrm((8,))
    p['aa_c3_w'], p['aa_c3_b'] = nrm((4, 8, 3)), nrm((4,))
    p['aa_c4_w'], p['aa_c4_b'] = nrm((2, 4, 3)), nrm((2,))
    p['aa_c5_w'], p['aa_c5_b'] = nrm((1, 2, 3)), nrm((1,))
    p['aa_fc_w'], p['aa_fc_b'] = nrm((SEQ_LEN, SEQ_LEN)), nrm((SEQ_LEN,))
    # exp_encode_net  MLP(5, 5, 16, 2), bias-free
    p['exp_w1'], p['exp_w2'] = nrm((EXP_IN_DIM, 16)), nrm((16, EYE_DIM - 1))
    # aud_ch_att_net  MLP(68, 32, 32, 2), bias-free
    p['aud_w1'], p['aud_w2'] = nrm((IN_DIM, AUD_HID)), nrm((AUD_HID, AUDIO_DIM))
    # eye_att_net     MLP(68, 6, 16, 2), bias-free
    p['eye_w1'], p['eye_w2'] = nrm((IN_DIM, EYE_HID)), nrm((EYE_HID, EYE_DIM))
    # sigma_net       MLP(106, 11, 64, 3), bias-free (W1 split by input source)
    p['sig_w1x'] = nrm((IN_DIM, HIDDEN_DIM))
    p['sig_w1w'] = nrm((AUDIO_DIM, HIDDEN_DIM))
    p['sig_w1e'] = nrm((EYE_DIM, HIDDEN_DIM))
    p['sig_w2'] = nrm((HIDDEN_DIM, HIDDEN_DIM))
    p['sig_w3'] = nrm((HIDDEN_DIM, OUT_DIM))
    return p


# ----------------------------------- main --------------------------------------
if __name__ == "__main__":
    key = jax.random.PRNGKey(0)
    k_p, k_x, k_e, k_a, k_emb = jax.random.split(key, 5)
    params = init_params(k_p)

    N = 300   # deliberately not a multiple of 128: exercises the ragged last tile
    xyz = jax.random.uniform(k_x, (N, 3), minval=-BOUND, maxval=BOUND,
                             dtype=jnp.float32)
    emb = 0.1 * jax.random.normal(k_emb, (N, EMBED_DIM), dtype=jnp.float32)
    x = jnp.concatenate([xyz, emb], axis=-1)                    # (300, 35)
    a = 0.1 * jax.random.normal(k_a, (SEQ_LEN, AUDIO_IN_DIM, WIN_SIZE),
                                dtype=jnp.float32)              # (8, 29, 16)
    e = 0.1 * jax.random.normal(k_e, (EYE_DIM,), dtype=jnp.float32)  # (6,)

    forward = jax.jit(motion_network_forward)
    out, (enc_x, enc_a, enc_e_vec) = forward(params, x, a, e)
    jax.block_until_ready(out)

    # cross-check the Pallas head against a plain-JAX f32 reference
    # (tolerance accounts for the bf16 streaming of activations/weights)
    h_ref, aud_ref, eye_ref = motion_head_ref(enc_x, enc_a, enc_e_vec, params)
    h_pal = jnp.concatenate([out['d_xyz'] / 0.01, out['d_rot'],
                             out['d_opa'], out['d_scale']], axis=-1)
    assert np.allclose(np.asarray(h_pal), np.asarray(h_ref),
                       rtol=2e-2, atol=2e-2)
    assert np.allclose(np.asarray(out['ambient_aud']), np.asarray(aud_ref),
                       rtol=2e-2, atol=2e-2)
    assert np.allclose(np.asarray(out['ambient_eye']), np.asarray(eye_ref),
                       rtol=2e-2, atol=2e-2)

    print("KERNEL_OK")
</pallas_src>

<mosaic_0001>
module attributes {stable_mosaic.version = 11 : i64} {
  func.func @motion_head_kernel(%arg0: i32, %arg1: memref<128x68xbf16, #tpu.memory_space<vmem>>, %arg2: memref<68x112xbf16, #tpu.memory_space<vmem>>, %arg3: memref<48x38xbf16, #tpu.memory_space<vmem>>, %arg4: memref<38x64xbf16, #tpu.memory_space<vmem>>, %arg5: memref<64x64xbf16, #tpu.memory_space<vmem>>, %arg6: memref<64x16xbf16, #tpu.memory_space<vmem>>, %arg7: memref<128x16xf32, #tpu.memory_space<vmem>>) attributes {dimension_semantics = [#tpu.dimension_semantics<parallel>], iteration_bounds = array<i64: 3>, scalar_prefetch = 0 : i64, scratch_operands = 0 : i64, tpu.core_type = #tpu.core_type<tc>, window_params = [{transform_indices = @transform_0, window_bounds = array<i64: 128, 68>}, {pipeline_mode = #tpu.pipeline_mode<synchronous>, transform_indices = @transform_1, window_bounds = array<i64: 68, 112>}, {pipeline_mode = #tpu.pipeline_mode<synchronous>, transform_indices = @transform_2, window_bounds = array<i64: 48, 38>}, {pipeline_mode = #tpu.pipeline_mode<synchronous>, transform_indices = @transform_3, window_bounds = array<i64: 38, 64>}, {pipeline_mode = #tpu.pipeline_mode<synchronous>, transform_indices = @transform_4, window_bounds = array<i64: 64, 64>}, {pipeline_mode = #tpu.pipeline_mode<synchronous>, transform_indices = @transform_5, window_bounds = array<i64: 64, 16>}, {transform_indices = @transform_6, window_bounds = array<i64: 128, 16>}]} {
    %c0 = arith.constant 0 : index
    %c0_0 = arith.constant 0 : index
    %0 = vector.load %arg1[%c0, %c0_0] : memref<128x68xbf16, #tpu.memory_space<vmem>>, vector<128x68xbf16>
    %c0_1 = arith.constant 0 : index
    %c0_2 = arith.constant 0 : index
    %1 = vector.load %arg2[%c0_1, %c0_2] : memref<68x112xbf16, #tpu.memory_space<vmem>>, vector<68x112xbf16>
    %cst = arith.constant dense<0.000000e+00> : vector<128x112xf32>
    %2 = tpu.matmul %0, %1, %cst {dimension_numbers = #tpu.dot_dimension_numbers<[1], [0], [0], [1], [0, 0, 1, 1], [], []>} : vector<128x68xbf16>, vector<68x112xbf16>, vector<128x112xf32> -> vector<128x112xf32>
    %3 = vector.extract_strided_slice %2 {offsets = [0, 0], sizes = [128, 48], strides = [1, 1]} : vector<128x112xf32> to vector<128x48xf32>
    %cst_3 = arith.constant 0.000000e+00 : f32
    %4 = vector.broadcast %cst_3 : f32 to vector<128x48xf32>
    %5 = arith.maximumf %3, %4 : vector<128x48xf32>
    %6 = vector.extract_strided_slice %2 {offsets = [0, 48], sizes = [128, 64], strides = [1, 1]} : vector<128x112xf32> to vector<128x64xf32>
    %7 = arith.truncf %5 : vector<128x48xf32> to vector<128x48xbf16>
    %c0_4 = arith.constant 0 : index
    %c0_5 = arith.constant 0 : index
    %8 = vector.load %arg3[%c0_4, %c0_5] : memref<48x38xbf16, #tpu.memory_space<vmem>>, vector<48x38xbf16>
    %cst_6 = arith.constant dense<0.000000e+00> : vector<128x38xf32>
    %9 = tpu.matmul %7, %8, %cst_6 {dimension_numbers = #tpu.dot_dimension_numbers<[1], [0], [0], [1], [0, 0, 1, 1], [], []>} : vector<128x48xbf16>, vector<48x38xbf16>, vector<128x38xf32> -> vector<128x38xf32>
    %10 = tpu.iota {dimensions = array<i32: 1>} : vector<128x38xi32>
    %c32_i32 = arith.constant 32 : i32
    %11 = vector.broadcast %c32_i32 : i32 to vector<128x38xi32>
    %12 = arith.cmpi slt, %10, %11 : vector<128x38xi32>
    %cst_7 = arith.constant 0.000000e+00 : f32
    %13 = vector.broadcast %cst_7 : f32 to vector<128x38xf32>
    %14 = arith.maximumf %9, %13 : vector<128x38xf32>
    %15 = arith.select %12, %9, %14 : vector<128x38xi1>, vector<128x38xf32>
    %16 = arith.mulf %15, %15 : vector<128x38xf32>
    %17 = vector.extract_strided_slice %16 {offsets = [0, 0], sizes = [128, 32], strides = [1, 1]} : vector<128x38xf32> to vector<128x32xf32>
    %cst_8 = arith.constant dense<0.000000e+00> : vector<128xf32>
    %18 = vector.multi_reduction <add>, %17, %cst_8 [1] : vector<128x32xf32> to vector<128xf32>
    %19 = vector.shape_cast %18 : vector<128xf32> to vector<128x1xf32>
    %20 = math.sqrt %19 : vector<128x1xf32>
    %21 = vector.extract_strided_slice %16 {offsets = [0, 32], sizes = [128, 6], strides = [1, 1]} : vector<128x38xf32> to vector<128x6xf32>
    %cst_9 = arith.constant dense<0.000000e+00> : vector<128xf32>
    %22 = vector.multi_reduction <add>, %21, %cst_9 [1] : vector<128x6xf32> to vector<128xf32>
    %23 = vector.shape_cast %22 : vector<128xf32> to vector<128x1xf32>
    %24 = math.sqrt %23 : vector<128x1xf32>
    %25 = arith.truncf %15 : vector<128x38xf32> to vector<128x38xbf16>
    %c0_10 = arith.constant 0 : index
    %c0_11 = arith.constant 0 : index
    %26 = vector.load %arg4[%c0_10, %c0_11] : memref<38x64xbf16, #tpu.memory_space<vmem>>, vector<38x64xbf16>
    %cst_12 = arith.constant dense<0.000000e+00> : vector<128x64xf32>
    %27 = tpu.matmul %25, %26, %cst_12 {dimension_numbers = #tpu.dot_dimension_numbers<[1], [0], [0], [1], [0, 0, 1, 1], [], []>} : vector<128x38xbf16>, vector<38x64xbf16>, vector<128x64xf32> -> vector<128x64xf32>
    %28 = arith.addf %6, %27 : vector<128x64xf32>
    %cst_13 = arith.constant 0.000000e+00 : f32
    %29 = vector.broadcast %cst_13 : f32 to vector<128x64xf32>
    %30 = arith.maximumf %28, %29 : vector<128x64xf32>
    %31 = arith.truncf %30 : vector<128x64xf32> to vector<128x64xbf16>
    %c0_14 = arith.constant 0 : index
    %c0_15 = arith.constant 0 : index
    %32 = vector.load %arg5[%c0_14, %c0_15] : memref<64x64xbf16, #tpu.memory_space<vmem>>, vector<64x64xbf16>
    %cst_16 = arith.constant dense<0.000000e+00> : vector<128x64xf32>
    %33 = tpu.matmul %31, %32, %cst_16 {dimension_numbers = #tpu.dot_dimension_numbers<[1], [0], [0], [1], [0, 0, 1, 1], [], []>} : vector<128x64xbf16>, vector<64x64xbf16>, vector<128x64xf32> -> vector<128x64xf32>
    %cst_17 = arith.constant 0.000000e+00 : f32
    %34 = vector.broadcast %cst_17 : f32 to vector<128x64xf32>
    %35 = arith.maximumf %33, %34 : vector<128x64xf32>
    %36 = arith.truncf %35 : vector<128x64xf32> to vector<128x64xbf16>
    %c0_18 = arith.constant 0 : index
    %c0_19 = arith.constant 0 : index
    %37 = vector.load %arg6[%c0_18, %c0_19] : memref<64x16xbf16, #tpu.memory_space<vmem>>, vector<64x16xbf16>
    %cst_20 = arith.constant dense<0.000000e+00> : vector<128x16xf32>
    %38 = tpu.matmul %36, %37, %cst_20 {dimension_numbers = #tpu.dot_dimension_numbers<[1], [0], [0], [1], [0, 0, 1, 1], [], []>} : vector<128x64xbf16>, vector<64x16xbf16>, vector<128x16xf32> -> vector<128x16xf32>
    %39 = tpu.iota {dimensions = array<i32: 1>} : vector<128x16xi32>
    %c11_i32 = arith.constant 11 : i32
    %40 = vector.broadcast %c11_i32 : i32 to vector<128x16xi32>
    %41 = arith.cmpi eq, %39, %40 : vector<128x16xi32>
    %c12_i32 = arith.constant 12 : i32
    %42 = vector.broadcast %c12_i32 : i32 to vector<128x16xi32>
    %43 = arith.cmpi eq, %39, %42 : vector<128x16xi32>
    %44 = vector.shape_cast %24 : vector<128x1xf32> to vector<128x1xf32>
    %45 = vector.broadcast %44 : vector<128x1xf32> to vector<128x16xf32>
    %46 = arith.select %43, %45, %38 : vector<128x16xi1>, vector<128x16xf32>
    %47 = vector.shape_cast %20 : vector<128x1xf32> to vector<128x1xf32>
    %48 = vector.broadcast %47 : vector<128x1xf32> to vector<128x16xf32>
    %49 = arith.select %41, %48, %46 : vector<128x16xi1>, vector<128x16xf32>
    %c0_21 = arith.constant 0 : index
    %c0_22 = arith.constant 0 : index
    %50 = vector.load %arg7[%c0_21, %c0_22] : memref<128x16xf32, #tpu.memory_space<vmem>>, vector<128x16xf32>
    tpu.vector_store %arg7[%c0_21, %c0_22], %49 {strides = array<i32>} : memref<128x16xf32, #tpu.memory_space<vmem>>, vector<128x16xf32>,
    return
  }
  func.func @transform_0(%arg0: i32) -> (i32, i32) {
    %c0_i32 = arith.constant 0 : i32
    %c0_i32_0 = arith.constant 0 : i32
    return %arg0, %c0_i32 : i32, i32
  }
  func.func @transform_1(%arg0: i32) -> (i32, i32) {
    %c0_i32 = arith.constant 0 : i32
    %c0_i32_0 = arith.constant 0 : i32
    %c0_i32_1 = arith.constant 0 : i32
    return %c0_i32, %c0_i32_0 : i32, i32
  }
  func.func @transform_2(%arg0: i32) -> (i32, i32) {
    %c0_i32 = arith.constant 0 : i32
    %c0_i32_0 = arith.constant 0 : i32
    %c0_i32_1 = arith.constant 0 : i32
    return %c0_i32, %c0_i32_0 : i32, i32
  }
  func.func @transform_3(%arg0: i32) -> (i32, i32) {
    %c0_i32 = arith.constant 0 : i32
    %c0_i32_0 = arith.constant 0 : i32
    %c0_i32_1 = arith.constant 0 : i32
    return %c0_i32, %c0_i32_0 : i32, i32
  }
  func.func @transform_4(%arg0: i32) -> (i32, i32) {
    %c0_i32 = arith.constant 0 : i32
    %c0_i32_0 = arith.constant 0 : i32
    %c0_i32_1 = arith.constant 0 : i32
    return %c0_i32, %c0_i32_0 : i32, i32
  }
  func.func @transform_5(%arg0: i32) -> (i32, i32) {
    %c0_i32 = arith.constant 0 : i32
    %c0_i32_0 = arith.constant 0 : i32
    %c0_i32_1 = arith.constant 0 : i32
    return %c0_i32, %c0_i32_0 : i32, i32
  }
  func.func @transform_6(%arg0: i32) -> (i32, i32) {
    %c0_i32 = arith.constant 0 : i32
    %c0_i32_0 = arith.constant 0 : i32
    return %arg0, %c0_i32 : i32, i32
  }
}

</mosaic_0001>

<llo_original>
// kernel: reverse
$region0: #{reverse}
  #allocation0 [shape = 's32[1]{0}', space=sflag, size = 0x4, scoped, tag = 'scoped memory for reverse']
  %s0 = inlined_call_operand.vmem [shape: f32[64,64,3], index: 0, kind: input, shape index: {}]
  %s1 = inlined_call_operand.vmem [shape: bf16[64,64,3], index: 1, kind: output, shape index: {}]
  %s2 = scalar_lea.vmem %s0, 128
  %v3 = vld [vmem:[%s2] sm:$0xff]
  %v4 = vpack.c.bf16 0.0, %v3
  %5 = vst [vmem:[%s1] sm:$0xf] %v4
  %s6 = scalar_lea.vmem %s0, 64
  %v7 = vld [vmem:[%s6] sm:$0xff]
  %s8 = scalar_lea.vmem %s1, 32
  %v9 = vpack.c.bf16 0.0, %v7
  %10 = vst [vmem:[%s8] sm:$0xf] %v9
  %v11 = vld [vmem:[%s0] sm:$0xff]
  %s12 = scalar_lea.vmem %s1, 64
  %v13 = vpack.c.bf16 0.0, %v11
  %14 = vst [vmem:[%s12] sm:$0xf] %v13
  %s15 = scalar_lea.vmem %s0, 136
  %v16 = vld [vmem:[%s15] sm:$0xff]
  %s17 = scalar_lea.vmem %s1, 4
  %v18 = vpack.c.bf16 0.0, %v16
  %19 = vst [vmem:[%s17] sm:$0xf] %v18
  %s20 = scalar_lea.vmem %s0, 72
  %v21 = vld [vmem:[%s20] sm:$0xff]
  %s22 = scalar_lea.vmem %s1, 36
  %v23 = vpack.c.bf16 0.0, %v21
  %24 = vst [vmem:[%s22] sm:$0xf] %v23
  %s25 = scalar_lea.vmem %s0, 8
  %v26 = vld [vmem:[%s25] sm:$0xff]
  %s27 = scalar_lea.vmem %s1, 68
  %v28 = vpack.c.bf16 0.0, %v26
  %29 = vst [vmem:[%s27] sm:$0xf] %v28
  %s30 = scalar_lea.vmem %s0, 144
  %v31 = vld [vmem:[%s30] sm:$0xff]
  %s32 = scalar_lea.vmem %s1, 8
  %v33 = vpack.c.bf16 0.0, %v31
  %34 = vst [vmem:[%s32] sm:$0xf] %v33
  %s35 = scalar_lea.vmem %s0, 80
  %v36 = vld [vmem:[%s35] sm:$0xff]
  %s37 = scalar_lea.vmem %s1, 40
  %v38 = vpack.c.bf16 0.0, %v36
  %39 = vst [vmem:[%s37] sm:$0xf] %v38
  %s40 = scalar_lea.vmem %s0, 16
  %v41 = vld [vmem:[%s40] sm:$0xff]
  %s42 = scalar_lea.vmem %s1, 72
  %v43 = vpack.c.bf16 0.0, %v41
  %44 = vst [vmem:[%s42] sm:$0xf] %v43
  %s45 = scalar_lea.vmem %s0, 152
  %v46 = vld [vmem:[%s45] sm:$0xff]
  %s47 = scalar_lea.vmem %s1, 12
  %v48 = vpack.c.bf16 0.0, %v46
  %49 = vst [vmem:[%s47] sm:$0xf] %v48
  %s50 = scalar_lea.vmem %s0, 88
  %v51 = vld [vmem:[%s50] sm:$0xff]
  %s52 = scalar_lea.vmem %s1, 44
  %v53 = vpack.c.bf16 0.0, %v51
  %54 = vst [vmem:[%s52] sm:$0xf] %v53
  %s55 = scalar_lea.vmem %s0, 24
  %v56 = vld [vmem:[%s55] sm:$0xff]
  %s57 = scalar_lea.vmem %s1, 76
  %v58 = vpack.c.bf16 0.0, %v56
  %59 = vst [vmem:[%s57] sm:$0xf] %v58
  %s60 = scalar_lea.vmem %s0, 160
  %v61 = vld [vmem:[%s60] sm:$0xff]
  %s62 = scalar_lea.vmem %s1, 16
  %v63 = vpack.c.bf16 0.0, %v61
  %64 = vst [vmem:[%s62] sm:$0xf] %v63
  %s65 = scalar_lea.vmem %s0, 96
  %v66 = vld [vmem:[%s65] sm:$0xff]
  %s67 = scalar_lea.vmem %s1, 48
  %v68 = vpack.c.bf16 0.0, %v66
  %69 = vst [vmem:[%s67] sm:$0xf] %v68
  %s70 = scalar_lea.vmem %s0, 32
  %v71 = vld [vmem:[%s70] sm:$0xff]
  %s72 = scalar_lea.vmem %s1, 80
  %v73 = vpack.c.bf16 0.0, %v71
  %74 = vst [vmem:[%s72] sm:$0xf] %v73
  %s75 = scalar_lea.vmem %s0, 168
  %v76 = vld [vmem:[%s75] sm:$0xff]
  %s77 = scalar_lea.vmem %s1, 20
  %v78 = vpack.c.bf16 0.0, %v76
  %79 = vst [vmem:[%s77] sm:$0xf] %v78
  %s80 = scalar_lea.vmem %s0, 104
  %v81 = vld [vmem:[%s80] sm:$0xff]
  %s82 = scalar_lea.vmem %s1, 52
  %v83 = vpack.c.bf16 0.0, %v81
  %84 = vst [vmem:[%s82] sm:$0xf] %v83
  %s85 = scalar_lea.vmem %s0, 40
  %v86 = vld [vmem:[%s85] sm:$0xff]
  %s87 = scalar_lea.vmem %s1, 84
  %v88 = vpack.c.bf16 0.0, %v86
  %89 = vst [vmem:[%s87] sm:$0xf] %v88
  %s90 = scalar_lea.vmem %s0, 176
  %v91 = vld [vmem:[%s90] sm:$0xff]
  %s92 = scalar_lea.vmem %s1, 24
  %v93 = vpack.c.bf16 0.0, %v91
  %94 = vst [vmem:[%s92] sm:$0xf] %v93
  %s95 = scalar_lea.vmem %s0, 112
  %v96 = vld [vmem:[%s95] sm:$0xff]
  %s97 = scalar_lea.vmem %s1, 56
  %v98 = vpack.c.bf16 0.0, %v96
  %99 = vst [vmem:[%s97] sm:$0xf] %v98
  %s100 = scalar_lea.vmem %s0, 48
  %v101 = vld [vmem:[%s100] sm:$0xff]
  %s102 = scalar_lea.vmem %s1, 88
  %v103 = vpack.c.bf16 0.0, %v101
  %104 = vst [vmem:[%s102] sm:$0xf] %v103
  %s105 = scalar_lea.vmem %s0, 184
  %v106 = vld [vmem:[%s105] sm:$0xff]
  %s107 = scalar_lea.vmem %s1, 28
  %v108 = vpack.c.bf16 0.0, %v106
  %109 = vst [vmem:[%s107] sm:$0xf] %v108
  %s110 = scalar_lea.vmem %s0, 120
  %v111 = vld [vmem:[%s110] sm:$0xff]
  %s112 = scalar_lea.vmem %s1, 60
  %v113 = vpack.c.bf16 0.0, %v111
  %114 = vst [vmem:[%s112] sm:$0xf] %v113
  %s115 = scalar_lea.vmem %s0, 56
  %v116 = vld [vmem:[%s115] sm:$0xff]
  %s117 = scalar_lea.vmem %s1, 92
  %v118 = vpack.c.bf16 0.0, %v116
  %119 = vst [vmem:[%s117] sm:$0xf] %v118

// kernel: motion_network_forward.1
$region0: #{motion_network_forward.1}
  #allocation0 [shape = 'u32[]', space=smem, size = 0x4, offset = 0x4, fixed_abs, tag = 'smem constant byte address 0x4 - core index']
  #allocation1 [shape = 'u32[72,128]{1,0:T(1,128)}', space=vmem, size = 0x9000, scoped, tag = 'internal scratch']
  %s0 = inlined_call_operand.vmem [shape: bf16[300,68], index: 0, kind: input, shape index: {}]
  %s1 = inlined_call_operand.vmem [shape: bf16[68,112], index: 1, kind: input, shape index: {}]
  %s2 = inlined_call_operand.vmem [shape: bf16[48,38], index: 2, kind: input, shape index: {}]
  %s3 = inlined_call_operand.vmem [shape: bf16[38,64], index: 3, kind: input, shape index: {}]
  %s4 = inlined_call_operand.vmem [shape: bf16[64,64], index: 4, kind: input, shape index: {}]
  %s5 = inlined_call_operand.vmem [shape: bf16[64,16], index: 5, kind: input, shape index: {}]
  %s6 = inlined_call_operand.vmem [shape: f32[300,16], index: 6, kind: output, shape index: {}]
  %s7 = sld [smem:[#allocation0]]
  $region105: #{motion_network_forward.1} parent=0
    _
  %s9 = ssub.s32 1, %s7
  %s10 = scalar_select 0, %s9, %s7
  $region1: #{motion_network_forward.1} parent=0
    #allocation2 [shape = 'u8[131072]{0}', space=vmem, size = 0x20000, scoped, tag = 'output window, operand 0']
    loop: start=0, step=1, limit=5
    $region2: #{motion_network_forward.1} parent=1 // loop_pre_header
      _
    $region3: #{motion_network_forward.1} parent=1 // loop_header
      %s12 = sphi 0, %s16
      %p13 = scmp.ge.s32.totalorder %s12, 5
      %s22 = sphi 0, %s24
      %s25 = sphi 0, %s22
      %s26 = sphi 0, %s25
      %s42 = sphi 0, %s26
      %s46 = sphi 0, %s46
      %s48 = sphi 0, %s46
      %s49 = sphi 0, %s48
      %s63 = sphi 0, %s49
      %s67 = sphi 0, %s67
      %s69 = sphi 0, %s67
      %s70 = sphi 0, %s69
      %s84 = sphi 0, %s70
      %s88 = sphi 0, %s88
      %s90 = sphi 0, %s88
      %s91 = sphi 0, %s90
      %s105 = sphi 0, %s91
      %s109 = sphi 0, %s109
      %s111 = sphi 0, %s109
      %s112 = sphi 0, %s111
      %s126 = sphi 0, %s112
      %s130 = sphi 0, %s130
      %s132 = sphi 0, %s130
      %s133 = sphi 0, %s132
      %s147 = sphi 0, %s133
      %s153 = sphi 0, %s155
      %s156 = sphi 0, %s153
      %s157 = sphi 0, %s156
      %s173 = sphi 0, %s157
    $region4: #{motion_network_forward.1} parent=1 // loop_header_branch
      %15 = sbr.rel (%p13) target = $region8
    $region5: #{motion_network_forward.1} parent=1 // loop_body
      %s17 = ssub.s32 %s12, 1
      %s18 = ssub.s32 %s12, 2
      %s19 = sadd.s32 %s12, 1
      %s20 = ssub.s32 %s12, %s19
      %p21 = scmp.eq.s32.totalorder %s20, 0
      %s23 = sadd.s32 %s22, 1
      %s24 = scalar_select %p21, %s22, %s23
      %p27 = pneg %p21
      %p28 = scmp.eq.s32.totalorder %s12, 2
      %p29 = por %p27, %p28
      %p30 = scmp.ne.s32.totalorder %s22, %s25
      %p31 = scmp.eq.s32.totalorder %s12, 0
      %p32 = por %p30, %p31
      %p33 = scmp.ne.s32.totalorder %s22, %s25
      %p34 = scmp.eq.s32.totalorder %s17, 2
      %p35 = por %p33, %p34
      %p36 = scmp.ne.s32.totalorder %s25, %s26
      %p37 = scmp.eq.s32.totalorder %s17, 0
      %p38 = por %p36, %p37
      %p39 = scmp.ne.s32.totalorder %s25, %s26
      %p40 = scmp.eq.s32.totalorder %s18, 2
      %p41 = por %p39, %p40
      %p43 = scmp.ne.s32.totalorder %s26, %s42
      %p44 = scmp.eq.s32.totalorder %s18, 0
      %p45 = por %p43, %p44
      %s47 = sadd.s32 %s46, 1
      %p50 = scmp.eq.s32.totalorder %s12, 2
      %p51 = scmp.ne.s32.totalorder %s46, %s48
      %p52 = scmp.eq.s32.totalorder %s12, 0
      %p53 = por %p51, %p52
      %p54 = scmp.ne.s32.totalorder %s46, %s48
      %p55 = scmp.eq.s32.totalorder %s17, 2
      %p56 = por %p54, %p55
      %p57 = scmp.ne.s32.totalorder %s48, %s49
      %p58 = scmp.eq.s32.totalorder %s17, 0
      %p59 = por %p57, %p58
      %p60 = scmp.ne.s32.totalorder %s48, %s49
      %p61 = scmp.eq.s32.totalorder %s18, 2
      %p62 = por %p60, %p61
      %p64 = scmp.ne.s32.totalorder %s49, %s63
      %p65 = scmp.eq.s32.totalorder %s18, 0
      %p66 = por %p64, %p65
      %s68 = sadd.s32 %s67, 1
      %p71 = scmp.eq.s32.totalorder %s12, 2
      %p72 = scmp.ne.s32.totalorder %s67, %s69
      %p73 = scmp.eq.s32.totalorder %s12, 0
      %p74 = por %p72, %p73
      %p75 = scmp.ne.s32.totalorder %s67, %s69
      %p76 = scmp.eq.s32.totalorder %s17, 2
      %p77 = por %p75, %p76
      %p78 = scmp.ne.s32.totalorder %s69, %s70
      %p79 = scmp.eq.s32.totalorder %s17, 0
      %p80 = por %p78, %p79
      %p81 = scmp.ne.s32.totalorder %s69, %s70
      %p82 = scmp.eq.s32.totalorder %s18, 2
      %p83 = por %p81, %p82
      %p85 = scmp.ne.s32.totalorder %s70, %s84
      %p86 = scmp.eq.s32.totalorder %s18, 0
      %p87 = por %p85, %p86
      %s89 = sadd.s32 %s88, 1
      %p92 = scmp.eq.s32.totalorder %s12, 2
      %p93 = scmp.ne.s32.totalorder %s88, %s90
      %p94 = scmp.eq.s32.totalorder %s12, 0
      %p95 = por %p93, %p94
      %p96 = scmp.ne.s32.totalorder %s88, %s90
      %p97 = scmp.eq.s32.totalorder %s17, 2
      %p98 = por %p96, %p97
      %p99 = scmp.ne.s32.totalorder %s90, %s91
      %p100 = scmp.eq.s32.totalorder %s17, 0
      %p101 = por %p99, %p100
      %p102 = scmp.ne.s32.totalorder %s90, %s91
      %p103 = scmp.eq.s32.totalorder %s18, 2
      %p104 = por %p102, %p103
      %p106 = scmp.ne.s32.totalorder %s91, %s105
      %p107 = scmp.eq.s32.totalorder %s18, 0
      %p108 = por %p106, %p107
      %s110 = sadd.s32 %s109, 1
      %p113 = scmp.eq.s32.totalorder %s12, 2
      %p114 = scmp.ne.s32.totalorder %s109, %s111
      %p115 = scmp.eq.s32.totalorder %s12, 0
      %p116 = por %p114, %p115
      %p117 = scmp.ne.s32.totalorder %s109, %s111
      %p118 = scmp.eq.s32.totalorder %s17, 2
      %p119 = por %p117, %p118
      %p120 = scmp.ne.s32.totalorder %s111, %s112
      %p121 = scmp.eq.s32.totalorder %s17, 0
      %p122 = por %p120, %p121
      %p123 = scmp.ne.s32.totalorder %s111, %s112
      %p124 = scmp.eq.s32.totalorder %s18, 2
      %p125 = por %p123, %p124
      %p127 = scmp.ne.s32.totalorder %s112, %s126
      %p128 = scmp.eq.s32.totalorder %s18, 0
      %p129 = por %p127, %p128
      %s131 = sadd.s32 %s130, 1
      %p134 = scmp.eq.s32.totalorder %s12, 2
      %p135 = scmp.ne.s32.totalorder %s130, %s132
      %p136 = scmp.eq.s32.totalorder %s12, 0
      %p137 = por %p135, %p136
      %p138 = scmp.ne.s32.totalorder %s130, %s132
      %p139 = scmp.eq.s32.totalorder %s17, 2
      %p140 = por %p138, %p139
      %p141 = scmp.ne.s32.totalorder %s132, %s133
      %p142 = scmp.eq.s32.totalorder %s17, 0
      %p143 = por %p141, %p142
      %p144 = scmp.ne.s32.totalorder %s132, %s133
      %p145 = scmp.eq.s32.totalorder %s18, 2
      %p146 = por %p144, %p145
      %p148 = scmp.ne.s32.totalorder %s133, %s147
      %p149 = scmp.eq.s32.totalorder %s18, 0
      %p150 = por %p148, %p149
      %s151 = ssub.s32 %s12, %s19
      %p152 = scmp.eq.s32.totalorder %s151, 0
      %s154 = sadd.s32 %s153, 1
      %s155 = scalar_select %p152, %s153, %s154
      %p158 = pneg %p152
      %p159 = scmp.eq.s32.totalorder %s12, 2
      %p160 = por %p158, %p159
      %p161 = scmp.ne.s32.totalorder %s153, %s156
      %p162 = scmp.eq.s32.totalorder %s12, 0
      %p163 = por %p161, %p162
      %p164 = scmp.ne.s32.totalorder %s153, %s156
      %p165 = scmp.eq.s32.totalorder %s17, 2
      %p166 = por %p164, %p165
      %p167 = scmp.ne.s32.totalorder %s156, %s157
      %p168 = scmp.eq.s32.totalorder %s17, 0
      %p169 = por %p167, %p168
      %p170 = scmp.ne.s32.totalorder %s156, %s157
      %p171 = scmp.eq.s32.totalorder %s18, 2
      %p172 = por %p170, %p171
      %p174 = scmp.ne.s32.totalorder %s157, %s173
      %p175 = scmp.eq.s32.totalorder %s18, 0
      %p176 = por %p174, %p175
      %p177 = scmp.le.s32.totalorder 1, %s12
      %p178 = scmp.lt.s32.totalorder %s12, 4
      %p179 = pnand %p177, %p178
      %p180 = pneg %p179
      // Predicated region
      $region9: #{motion_network_forward.1} parent=5 // pred_check
        _
      $region10: #{motion_network_forward.1} parent=5 // pred_check_branch
        %182 = sbr.rel (%p179) target = $region12
      $region11: #{motion_network_forward.1} parent=5 // pred_region
        %s183 = ssub.s32 %s12, 1
        // Predicated region
        $region13: #{motion_network_forward.1} parent=11 // pred_check
          %p184 = pneg %p59
        $region14: #{motion_network_forward.1} parent=11 // pred_check_branch
          %186 = sbr.rel (%p184) target = $region16
        $region15: #{motion_network_forward.1} parent=11 // pred_region
          _
        $region16: #{motion_network_forward.1} parent=11 // pred_fallthru
          _
        // Predicated region
        $region17: #{motion_network_forward.1} parent=11 // pred_check
          %p187 = pneg %p80
        $region18: #{motion_network_forward.1} parent=11 // pred_check_branch
          %189 = sbr.rel (%p187) target = $region20
        $region19: #{motion_network_forward.1} parent=11 // pred_region
          _
        $region20: #{motion_network_forward.1} parent=11 // pred_fallthru
          _
        // Predicated region
        $region21: #{motion_network_forward.1} parent=11 // pred_check
          %p190 = pneg %p101
        $region22: #{motion_network_forward.1} parent=11 // pred_check_branch
          %192 = sbr.rel (%p190) target = $region24
        $region23: #{motion_network_forward.1} parent=11 // pred_region
          _
        $region24: #{motion_network_forward.1} parent=11 // pred_fallthru
          _
        // Predicated region
        $region25: #{motion_network_forward.1} parent=11 // pred_check
          %p193 = pneg %p122
        $region26: #{motion_network_forward.1} parent=11 // pred_check_branch
          %195 = sbr.rel (%p193) target = $region28
        $region27: #{motion_network_forward.1} parent=11 // pred_region
          _
        $region28: #{motion_network_forward.1} parent=11 // pred_fallthru
          _
        // Predicated region
        $region29: #{motion_network_forward.1} parent=11 // pred_check
          %p196 = pneg %p143
        $region30: #{motion_network_forward.1} parent=11 // pred_check_branch
          %198 = sbr.rel (%p196) target = $region32
        $region31: #{motion_network_forward.1} parent=11 // pred_region
          _
        $region32: #{motion_network_forward.1} parent=11 // pred_fallthru
          _
      $region12: #{motion_network_forward.1} parent=5 // pred_fallthru
        _
      %p199 = scmp.lt.s32.totalorder %s12, 3
      // Predicated region
      $region33: #{motion_network_forward.1} parent=5 // pred_check
        %p200 = pneg %p199
      $region34: #{motion_network_forward.1} parent=5 // pred_check_branch
        %202 = sbr.rel (%p200) target = $region36
      $region35: #{motion_network_forward.1} parent=5 // pred_region
        // Predicated region
        $region37: #{motion_network_forward.1} parent=35 // pred_check
          %p203 = pneg %p32
        $region38: #{motion_network_forward.1} parent=35 // pred_check_branch
          %205 = sbr.rel (%p203) target = $region40
        $region39: #{motion_network_forward.1} parent=35 // pred_region
          %s206 = smul.u32 16, %s12
          %s207 = ssub.s32 38, %s206
          %p208 = scmp.lt.s32.totalorder %s207, 16
          %s209 = scalar_select %p208, %s207, 16
          %s210 = smul.u32 4, %s209
          %p211 = scmp.lt.s32.totalorder %s206, 37
          %s212 = scalar_select %p211, %s206, 37
          %s213 = smul.addr %s212, 4
          %s214 = scalar_lea.vmem %s0, %s213
          %s215 = smul.u32 16, %s12
          %s216 = ssub.s32 38, %s215
          %p217 = scmp.lt.s32.totalorder %s216, 16
          %s218 = scalar_select %p217, %s216, 16
          %s219 = smul.u32 4, %s218
        $region40: #{motion_network_forward.1} parent=35 // pred_fallthru
          _
      $region36: #{motion_network_forward.1} parent=5 // pred_fallthru
        _
      %p220 = scmp.le.s32.totalorder 1, %s12
      %p221 = scmp.lt.s32.totalorder %s12, 4
      %p222 = pnand %p220, %p221
      %p223 = pneg %p222
      // Predicated region
      $region41: #{motion_network_forward.1} parent=5 // pred_check
        _
      $region42: #{motion_network_forward.1} parent=5 // pred_check_branch
        %225 = sbr.rel (%p222) target = $region44
      $region43: #{motion_network_forward.1} parent=5 // pred_region
        %s226 = ssub.s32 %s12, 1
        %s227 = smul.u32 16, %s17
        %s228 = ssub.s32 38, %s227
        %p229 = scmp.lt.s32.totalorder %s228, 16
        %s230 = scalar_select %p229, %s228, 16
        %s231 = smul.u32 4, %s230
        %p232 = scmp.lt.s32.totalorder %s227, 37
        %s233 = scalar_select %p232, %s227, 37
        %s234 = smul.addr %s233, 4
        %s235 = scalar_lea.vmem %s0, %s234
        %p236 = pneg %p38
        %p237 = pneg %p35
        %p238 = pneg %p59
        %p239 = pneg %p56
        %p240 = pneg %p80
        %p241 = pneg %p77
        %p242 = pneg %p101
        %p243 = pneg %p98
        %p244 = pneg %p122
        %p245 = pneg %p119
        %p246 = pneg %p143
        %p247 = pneg %p140
        %p248 = pneg %p169
        %p249 = pneg %p166
        %s250 = sand.u32 %s156, 1
        %s251 = sand.u32 %s156, 1
        %s252 = smul.addr %s251, 128
        %s253 = scalar_lea.vmem [#allocation2], %s252
        %s254 = smul.u32 16, %s17
        %s255 = ssub.s32 38, %s254
        %p256 = scmp.lt.s32.totalorder %s255, 16
        %s257 = scalar_select %p256, %s255, 16
        %s258 = smul.u32 4, %s257
        %p259 = scmp.lt.s32.totalorder %s254, 37
        %s260 = scalar_select %p259, %s254, 37
        %s261 = smul.addr %s260, 4
        %s262 = scalar_lea.vmem %s0, %s261
        %s263 = smul.u32 16, %s17
        %s264 = ssub.s32 38, %s263
        %p265 = scmp.lt.s32.totalorder %s264, 16
        %s266 = scalar_select %p265, %s264, 16
        %s267 = smul.u32 4, %s266
        %s268 = smul.u32 16, %s17
        %s269 = ssub.s32 38, %s268
        %p270 = scmp.lt.s32.totalorder %s269, 16
        %s271 = scalar_select %p270, %s269, 16
        %s272 = smul.u32 8, %s271
        %v274 = vld [vmem:[%s262] sm:$0xf]
        %v275 = vld [vmem:[%s262 + $0x4] sm:$0xf]
        %v276 = vld [vmem:[%s262 + $0x8] sm:$0xf]
        %v277 = vld [vmem:[%s262 + $0xc] sm:$0xf]
        %v278 = vld [vmem:[%s262 + $0x10] sm:$0xf]
        %v279 = vld [vmem:[%s262 + $0x14] sm:$0xf]
        %v280 = vld [vmem:[%s262 + $0x18] sm:$0xf]
        %v281 = vld [vmem:[%s262 + $0x1c] sm:$0xf]
        %v282 = vld [vmem:[%s262 + $0x20] sm:$0xf]
        %v283 = vld [vmem:[%s262 + $0x24] sm:$0xf]
        %v284 = vld [vmem:[%s262 + $0x28] sm:$0xf]
        %v285 = vld [vmem:[%s262 + $0x2c] sm:$0xf]
        %v286 = vld [vmem:[%s262 + $0x30] sm:$0xf]
        %v287 = vld [vmem:[%s262 + $0x34] sm:$0xf]
        %v288 = vld [vmem:[%s262 + $0x38] sm:$0xf]
        %v289 = vld [vmem:[%s262 + $0x3c] sm:$0xf]
        %v290 = vld [vmem:[%s1] sm:$0xf]
        %v291 = vld [vmem:[%s1 + $0x4] sm:$0xf]
        %v292 = vld [vmem:[%s1 + $0x8] sm:$0xf]
        %v293 = vld [vmem:[%s1 + $0xc] sm:$0xf]
        %v294 = vld [vmem:[%s1 + $0x10] sm:$0xf]
        %v295 = vld [vmem:[%s1 + $0x14] sm:$0xf]
        %v296 = vld [vmem:[%s1 + $0x18] sm:$0xf]
        %v297 = vld [vmem:[%s1 + $0x1c] sm:$0xf]
        %v298 = vld [vmem:[%s1 + $0x20] sm:$0x3]
        %v315 = vunpack.c.l.b16 %v274
        %v316 = vunpack.c.l.b16 %v275
        %v317 = vunpack.c.l.b16 %v276
        %v318 = vunpack.c.l.b16 %v277
        %v319 = vunpack.c.l.b16 %v278
        %v320 = vunpack.c.l.b16 %v279
        %v321 = vunpack.c.l.b16 %v280
        %v322 = vunpack.c.l.b16 %v281
        %v323 = vunpack.c.l.b16 %v282
        %v324 = vunpack.c.l.b16 %v283
        %v325 = vunpack.c.l.b16 %v284
        %v326 = vunpack.c.l.b16 %v285
        %v327 = vunpack.c.l.b16 %v286
        %v328 = vunpack.c.l.b16 %v287
        %v329 = vunpack.c.l.b16 %v288
        %v330 = vunpack.c.l.b16 %v289
        %v331 = vpack.c.b16 %v316, %v315
        %v332 = vpack.c.b16 %v318, %v317
        %v333 = vpack.c.b16 %v320, %v319
        %v334 = vpack.c.b16 %v322, %v321
        %v335 = vpack.c.b16 %v324, %v323
        %v336 = vpack.c.b16 %v326, %v325
        %v337 = vpack.c.b16 %v328, %v327
        %v338 = vpack.c.b16 %v330, %v329
        %v348 = vunpack.c.l.b16 %v290
        %v349 = vunpack.c.l.b16 %v291
        %v350 = vunpack.c.l.b16 %v292
        %v351 = vunpack.c.l.b16 %v293
        %v352 = vunpack.c.l.b16 %v294
        %v353 = vunpack.c.l.b16 %v295
        %v354 = vunpack.c.l.b16 %v296
        %v355 = vunpack.c.l.b16 %v297
        %v356 = vunpack.c.l.b16 %v298
        %v357 = vpack.c.b16 %v349, %v348
        %v358 = vpack.c.b16 %v351, %v350
        %v359 = vpack.c.b16 %v353, %v352
        %v360 = vpack.c.b16 %v355, %v354
        %v361 = vpack.c.b16 %v356, %v356
        %vm366 = vcmask 556032
        %v368 = vsel %vm366, %v331, 0
        %v371 = vsel %vm366, %v332, 0
        %v374 = vsel %vm366, %v333, 0
        %v377 = vsel %vm366, %v334, 0
        %v380 = vsel %vm366, %v335, 0
        %v383 = vsel %vm366, %v336, 0
        %v386 = vsel %vm366, %v337, 0
        %v389 = vsel %vm366, %v338, 0
        %vm391 = vcmask 1041408
        %v393 = vsel %vm391, %v361, 0
        %395 = vmatpush.bf16.msra.mxu0 0
        %396 = vmatpush.bf16.msra.mxu0 0
        %397 = vmatpush.bf16.msra.mxu0 0
        %398 = vmatpush.bf16.msra.mxu0 %v393
        %399 = vmatpush.bf16.msra.mxu0 %v360
        %400 = vmatpush.bf16.msra.mxu0 %v359
        %401 = vmatpush.bf16.msra.mxu0 %v358
        %402 = vmatpush.bf16.msra.mxu0 %v357
        %403 = vmatmul.bf16.gmra.mxu0 %v368
        %v404 = vpop.f32.mrf.mxu0
        %v405 = vadd.f32 0.0, %v404
        %v406 = vpop.f32.mrf.mxu0
        %v407 = vadd.f32 0.0, %v406
        %408 = vmatmul.bf16.gmra.mxu0 %v371
        %v409 = vpop.f32.mrf.mxu0
        %v410 = vadd.f32 0.0, %v409
        %v411 = vpop.f32.mrf.mxu0
        %v412 = vadd.f32 0.0, %v411
        %413 = vmatmul.bf16.gmra.mxu0 %v374
        %v414 = vpop.f32.mrf.mxu0
        %v415 = vadd.f32 0.0, %v414
        %v416 = vpop.f32.mrf.mxu0
        %v417 = vadd.f32 0.0, %v416
        %418 = vmatmul.bf16.gmra.mxu0 %v377
        %v419 = vpop.f32.mrf.mxu0
        %v420 = vadd.f32 0.0, %v419
        %v421 = vpop.f32.mrf.mxu0
        %v422 = vadd.f32 0.0, %v421
        %423 = vmatmul.bf16.gmra.mxu0 %v380
        %v424 = vpop.f32.mrf.mxu0
        %v425 = vadd.f32 0.0, %v424
        %v426 = vpop.f32.mrf.mxu0
        %v427 = vadd.f32 0.0, %v426
        %428 = vmatmul.bf16.gmra.mxu0 %v383
        %v429 = vpop.f32.mrf.mxu0
        %v430 = vadd.f32 0.0, %v429
        %v431 = vpop.f32.mrf.mxu0
        %v432 = vadd.f32 0.0, %v431
        %433 = vmatmul.bf16.gmra.mxu0 %v386
        %v434 = vpop.f32.mrf.mxu0
        %v435 = vadd.f32 0.0, %v434
        %v436 = vpop.f32.mrf.mxu0
        %v437 = vadd.f32 0.0, %v436
        %438 = vmatmul.bf16.gmra.mxu0 %v389
        %v439 = vpop.f32.mrf.mxu0
        %v440 = vadd.f32 0.0, %v439
        %v441 = vpop.f32.mrf.mxu0
        %v442 = vadd.f32 0.0, %v441
        %443 = vdwg.mxu0
        %v444 = vmax.f32 %v405, 0.0
        %v445 = vmax.f32 %v407, 0.0
        %v446 = vmax.f32 %v410, 0.0
        %v447 = vmax.f32 %v412, 0.0
        %v448 = vmax.f32 %v415, 0.0
        %v449 = vmax.f32 %v417, 0.0
        %v450 = vmax.f32 %v420, 0.0
        %v451 = vmax.f32 %v422, 0.0
        %v452 = vmax.f32 %v425, 0.0
        %v453 = vmax.f32 %v427, 0.0
        %v454 = vmax.f32 %v430, 0.0
        %v455 = vmax.f32 %v432, 0.0
        %v456 = vmax.f32 %v435, 0.0
        %v457 = vmax.f32 %v437, 0.0
        %v458 = vmax.f32 %v440, 0.0
        %v459 = vmax.f32 %v442, 0.0
        %v460 = vpack.c.bf16 %v445, %v444
        %v461 = vpack.c.bf16 %v447, %v446
        %v462 = vpack.c.bf16 %v449, %v448
        %v463 = vpack.c.bf16 %v451, %v450
        %v464 = vpack.c.bf16 %v453, %v452
        %v465 = vpack.c.bf16 %v455, %v454
        %v466 = vpack.c.bf16 %v457, %v456
        %v467 = vpack.c.bf16 %v459, %v458
        %v468 = vld [vmem:[%s2] sm:$0xf]
        %v469 = vld [vmem:[%s2 + $0x4] sm:$0xf]
        %v470 = vld [vmem:[%s2 + $0x8] sm:$0xf]
        %v471 = vld [vmem:[%s2 + $0xc] sm:$0xf]
        %v472 = vld [vmem:[%s2 + $0x10] sm:$0xf]
        %v473 = vld [vmem:[%s2 + $0x14] sm:$0xf]
        %v480 = vunpack.c.l.b16 %v468
        %v481 = vunpack.c.l.b16 %v469
        %v482 = vunpack.c.l.b16 %v470
        %v483 = vunpack.c.l.b16 %v471
        %v484 = vunpack.c.l.b16 %v472
        %v485 = vunpack.c.l.b16 %v473
        %v486 = vpack.c.b16 %v481, %v480
        %v487 = vpack.c.b16 %v483, %v482
        %v488 = vpack.c.b16 %v485, %v484
        %vm492 = vcmask 392192
        %v494 = vsel %vm492, %v460, 0
        %v497 = vsel %vm492, %v461, 0
        %v500 = vsel %vm492, %v462, 0
        %v503 = vsel %vm492, %v463, 0
        %v506 = vsel %vm492, %v464, 0
        %v509 = vsel %vm492, %v465, 0
        %v512 = vsel %vm492, %v466, 0
        %v515 = vsel %vm492, %v467, 0
        %517 = vmatpush.bf16.msra.mxu0 0
        %518 = vmatpush.bf16.msra.mxu0 0
        %519 = vmatpush.bf16.msra.mxu0 0
        %520 = vmatpush.bf16.msra.mxu0 0
        %521 = vmatpush.bf16.msra.mxu0 0
        %522 = vmatpush.bf16.msra.mxu0 %v488
        %523 = vmatpush.bf16.msra.mxu0 %v487
        %524 = vmatpush.bf16.msra.mxu0 %v486
        %525 = vmatmul.bf16.gmra.mxu0 %v494
        %v526 = vpop.f32.mrf.mxu0
        %v527 = vadd.f32 0.0, %v526
        %v528 = vpop.f32.mrf.mxu0
        %v529 = vadd.f32 0.0, %v528
        %530 = vmatmul.bf16.gmra.mxu0 %v497
        %v531 = vpop.f32.mrf.mxu0
        %v532 = vadd.f32 0.0, %v531
        %v533 = vpop.f32.mrf.mxu0
        %v534 = vadd.f32 0.0, %v533
        %535 = vmatmul.bf16.gmra.mxu0 %v500
        %v536 = vpop.f32.mrf.mxu0
        %v537 = vadd.f32 0.0, %v536
        %v538 = vpop.f32.mrf.mxu0
        %v539 = vadd.f32 0.0, %v538
        %540 = vmatmul.bf16.gmra.mxu0 %v503
        %v541 = vpop.f32.mrf.mxu0
        %v542 = vadd.f32 0.0, %v541
        %v543 = vpop.f32.mrf.mxu0
        %v544 = vadd.f32 0.0, %v543
        %545 = vmatmul.bf16.gmra.mxu0 %v506
        %v546 = vpop.f32.mrf.mxu0
        %v547 = vadd.f32 0.0, %v546
        %v548 = vpop.f32.mrf.mxu0
        %v549 = vadd.f32 0.0, %v548
        %550 = vmatmul.bf16.gmra.mxu0 %v509
        %v551 = vpop.f32.mrf.mxu0
        %v552 = vadd.f32 0.0, %v551
        %v553 = vpop.f32.mrf.mxu0
        %v554 = vadd.f32 0.0, %v553
        %555 = vmatmul.bf16.gmra.mxu0 %v512
        %v556 = vpop.f32.mrf.mxu0
        %v557 = vadd.f32 0.0, %v556
        %v558 = vpop.f32.mrf.mxu0
        %v559 = vadd.f32 0.0, %v558
        %560 = vmatmul.bf16.gmra.mxu0 %v515
        %v561 = vpop.f32.mrf.mxu0
        %v562 = vadd.f32 0.0, %v561
        %v563 = vpop.f32.mrf.mxu0
        %v564 = vadd.f32 0.0, %v563
        %565 = vdwg.mxu0
        %v566 = vlaneseq
        %v567 = vand.u32 %v566, 127
        %vm568 = vcmp.lt.s32.totalorder %v567, 32
        %v569 = vmax.f32 %v527, 0.0
        %v570 = vmax.f32 %v529, 0.0
        %v571 = vmax.f32 %v532, 0.0
        %v572 = vmax.f32 %v534, 0.0
        %v573 = vmax.f32 %v537, 0.0
        %v574 = vmax.f32 %v539, 0.0
        %v575 = vmax.f32 %v542, 0.0
        %v576 = vmax.f32 %v544, 0.0
        %v577 = vmax.f32 %v547, 0.0
        %v578 = vmax.f32 %v549, 0.0
        %v579 = vmax.f32 %v552, 0.0
        %v580 = vmax.f32 %v554, 0.0
        %v581 = vmax.f32 %v557, 0.0
        %v582 = vmax.f32 %v559, 0.0
        %v583 = vmax.f32 %v562, 0.0
        %v584 = vmax.f32 %v564, 0.0
        %v585 = vsel %vm568, %v527, %v569
        %v586 = vsel %vm568, %v529, %v570
        %v587 = vsel %vm568, %v532, %v571
        %v588 = vsel %vm568, %v534, %v572
        %v589 = vsel %vm568, %v537, %v573
        %v590 = vsel %vm568, %v539, %v574
        %v591 = vsel %vm568, %v542, %v575
        %v592 = vsel %vm568, %v544, %v576
        %v593 = vsel %vm568, %v547, %v577
        %v594 = vsel %vm568, %v549, %v578
        %v595 = vsel %vm568, %v552, %v579
        %v596 = vsel %vm568, %v554, %v580
        %v597 = vsel %vm568, %v557, %v581
        %v598 = vsel %vm568, %v559, %v582
        %v599 = vsel %vm568, %v562, %v583
        %v600 = vsel %vm568, %v564, %v584
        %v601 = vmul.f32 %v585, %v585
        %v602 = vmul.f32 %v586, %v586
        %v603 = vmul.f32 %v587, %v587
        %v604 = vmul.f32 %v588, %v588
        %v605 = vmul.f32 %v589, %v589
        %v606 = vmul.f32 %v590, %v590
        %v607 = vmul.f32 %v591, %v591
        %v608 = vmul.f32 %v592, %v592
        %v609 = vmul.f32 %v593, %v593
        %v610 = vmul.f32 %v594, %v594
        %v611 = vmul.f32 %v595, %v595
        %v612 = vmul.f32 %v596, %v596
        %v613 = vmul.f32 %v597, %v597
        %v614 = vmul.f32 %v598, %v598
        %v615 = vmul.f32 %v599, %v599
        %v616 = vmul.f32 %v600, %v600
        %vm617 = vcmask 261120
        %v618 = vsel %vm617, %v601, 0.0
        %619 = vadd.xlane.f32.xlu0 %v618
        %v620 = vpop.xlane.xlu0 %619
        %v621 = vsel %vm617, %v602, 0.0
        %622 = vadd.xlane.f32.xlu0 %v621
        %v623 = vpop.xlane.xlu0 %622
        %v624 = vsel %vm617, %v603, 0.0
        %625 = vadd.xlane.f32.xlu0 %v624
        %v626 = vpop.xlane.xlu0 %625
        %v627 = vsel %vm617, %v604, 0.0
        %628 = vadd.xlane.f32.xlu0 %v627
        %v629 = vpop.xlane.xlu0 %628
        %v630 = vsel %vm617, %v605, 0.0
        %631 = vadd.xlane.f32.xlu0 %v630
        %v632 = vpop.xlane.xlu0 %631
        %v633 = vsel %vm617, %v606, 0.0
        %634 = vadd.xlane.f32.xlu0 %v633
        %v635 = vpop.xlane.xlu0 %634
        %v636 = vsel %vm617, %v607, 0.0
        %637 = vadd.xlane.f32.xlu0 %v636
        %v638 = vpop.xlane.xlu0 %637
        %v639 = vsel %vm617, %v608, 0.0
        %640 = vadd.xlane.f32.xlu0 %v639
        %v641 = vpop.xlane.xlu0 %640
        %v642 = vsel %vm617, %v609, 0.0
        %643 = vadd.xlane.f32.xlu0 %v642
        %v644 = vpop.xlane.xlu0 %643
        %v645 = vsel %vm617, %v610, 0.0
        %646 = vadd.xlane.f32.xlu0 %v645
        %v647 = vpop.xlane.xlu0 %646
        %v648 = vsel %vm617, %v611, 0.0
        %649 = vadd.xlane.f32.xlu0 %v648
        %v650 = vpop.xlane.xlu0 %649
        %v651 = vsel %vm617, %v612, 0.0
        %652 = vadd.xlane.f32.xlu0 %v651
        %v653 = vpop.xlane.xlu0 %652
        %v654 = vsel %vm617, %v613, 0.0
        %655 = vadd.xlane.f32.xlu0 %v654
        %v656 = vpop.xlane.xlu0 %655
        %v657 = vsel %vm617, %v614, 0.0
        %658 = vadd.xlane.f32.xlu0 %v657
        %v659 = vpop.xlane.xlu0 %658
        %v660 = vsel %vm617, %v615, 0.0
        %661 = vadd.xlane.f32.xlu0 %v660
        %v662 = vpop.xlane.xlu0 %661
        %v663 = vsel %vm617, %v616, 0.0
        %664 = vadd.xlane.f32.xlu0 %v663
        %v665 = vpop.xlane.xlu0 %664
        %v666 = vrsqrt.pop %v620
        %v667 = vmul.f32 %v666, %v620
        %v668 = vmul.f32 %v667, %v666
        %v669 = vmul.f32 0.5, %v668
        %v670 = vsub.f32 1.5, %v669
        %v671 = vmul.f32 %v666, %v670
        %v672 = vmul.f32 %v620, %v671
        %vm673 = vcmp.eq.f32.partialorder %v620, inf
        %v674 = vsel %vm673, %v620, %v672
        %vm675 = vcmp.eq.f32.partialorder %v620, 0.0
        %v676 = vand.u32 %v620, 2147483648
        %v677 = vsel %vm675, %v676, %v674
        %v678 = vrsqrt.pop %v623
        %v679 = vmul.f32 %v678, %v623
        %v680 = vmul.f32 %v679, %v678
        %v681 = vmul.f32 0.5, %v680
        %v682 = vsub.f32 1.5, %v681
        %v683 = vmul.f32 %v678, %v682
        %v684 = vmul.f32 %v623, %v683
        %vm685 = vcmp.eq.f32.partialorder %v623, inf
        %v686 = vsel %vm685, %v623, %v684
        %vm687 = vcmp.eq.f32.partialorder %v623, 0.0
        %v688 = vand.u32 %v623, 2147483648
        %v689 = vsel %vm687, %v688, %v686
        %v690 = vrsqrt.pop %v626
        %v691 = vmul.f32 %v690, %v626
        %v692 = vmul.f32 %v691, %v690
        %v693 = vmul.f32 0.5, %v692
        %v694 = vsub.f32 1.5, %v693
        %v695 = vmul.f32 %v690, %v694
        %v696 = vmul.f32 %v626, %v695
        %vm697 = vcmp.eq.f32.partialorder %v626, inf
        %v698 = vsel %vm697, %v626, %v696
        %vm699 = vcmp.eq.f32.partialorder %v626, 0.0
        %v700 = vand.u32 %v626, 2147483648
        %v701 = vsel %vm699, %v700, %v698
        %v702 = vrsqrt.pop %v629
        %v703 = vmul.f32 %v702, %v629
        %v704 = vmul.f32 %v703, %v702
        %v705 = vmul.f32 0.5, %v704
        %v706 = vsub.f32 1.5, %v705
        %v707 = vmul.f32 %v702, %v706
        %v708 = vmul.f32 %v629, %v707
        %vm709 = vcmp.eq.f32.partialorder %v629, inf
        %v710 = vsel %vm709, %v629, %v708
        %vm711 = vcmp.eq.f32.partialorder %v629, 0.0
        %v712 = vand.u32 %v629, 2147483648
        %v713 = vsel %vm711, %v712, %v710
        %v714 = vrsqrt.pop %v632
        %v715 = vmul.f32 %v714, %v632
        %v716 = vmul.f32 %v715, %v714
        %v717 = vmul.f32 0.5, %v716
        %v718 = vsub.f32 1.5, %v717
        %v719 = vmul.f32 %v714, %v718
        %v720 = vmul.f32 %v632, %v719
        %vm721 = vcmp.eq.f32.partialorder %v632, inf
        %v722 = vsel %vm721, %v632, %v720
        %vm723 = vcmp.eq.f32.partialorder %v632, 0.0
        %v724 = vand.u32 %v632, 2147483648
        %v725 = vsel %vm723, %v724, %v722
        %v726 = vrsqrt.pop %v635
        %v727 = vmul.f32 %v726, %v635
        %v728 = vmul.f32 %v727, %v726
        %v729 = vmul.f32 0.5, %v728
        %v730 = vsub.f32 1.5, %v729
        %v731 = vmul.f32 %v726, %v730
        %v732 = vmul.f32 %v635, %v731
        %vm733 = vcmp.eq.f32.partialorder %v635, inf
        %v734 = vsel %vm733, %v635, %v732
        %vm735 = vcmp.eq.f32.partialorder %v635, 0.0
        %v736 = vand.u32 %v635, 2147483648
        %v737 = vsel %vm735, %v736, %v734
        %v738 = vrsqrt.pop %v638
        %v739 = vmul.f32 %v738, %v638
        %v740 = vmul.f32 %v739, %v738
        %v741 = vmul.f32 0.5, %v740
        %v742 = vsub.f32 1.5, %v741
        %v743 = vmul.f32 %v738, %v742
        %v744 = vmul.f32 %v638, %v743
        %vm745 = vcmp.eq.f32.partialorder %v638, inf
        %v746 = vsel %vm745, %v638, %v744
        %vm747 = vcmp.eq.f32.partialorder %v638, 0.0
        %v748 = vand.u32 %v638, 2147483648
        %v749 = vsel %vm747, %v748, %v746
        %v750 = vrsqrt.pop %v641
        %v751 = vmul.f32 %v750, %v641
        %v752 = vmul.f32 %v751, %v750
        %v753 = vmul.f32 0.5, %v752
        %v754 = vsub.f32 1.5, %v753
        %v755 = vmul.f32 %v750, %v754
        %v756 = vmul.f32 %v641, %v755
        %vm757 = vcmp.eq.f32.partialorder %v641, inf
        %v758 = vsel %vm757, %v641, %v756
        %vm759 = vcmp.eq.f32.partialorder %v641, 0.0
        %v760 = vand.u32 %v641, 2147483648
        %v761 = vsel %vm759, %v760, %v758
        %v762 = vrsqrt.pop %v644
        %v763 = vmul.f32 %v762, %v644
        %v764 = vmul.f32 %v763, %v762
        %v765 = vmul.f32 0.5, %v764
        %v766 = vsub.f32 1.5, %v765
        %v767 = vmul.f32 %v762, %v766
        %v768 = vmul.f32 %v644, %v767
        %vm769 = vcmp.eq.f32.partialorder %v644, inf
        %v770 = vsel %vm769, %v644, %v768
        %vm771 = vcmp.eq.f32.partialorder %v644, 0.0
        %v772 = vand.u32 %v644, 2147483648
        %v773 = vsel %vm771, %v772, %v770
        %v774 = vrsqrt.pop %v647
        %v775 = vmul.f32 %v774, %v647
        %v776 = vmul.f32 %v775, %v774
        %v777 = vmul.f32 0.5, %v776
        %v778 = vsub.f32 1.5, %v777
        %v779 = vmul.f32 %v774, %v778
        %v780 = vmul.f32 %v647, %v779
        %vm781 = vcmp.eq.f32.partialorder %v647, inf
        %v782 = vsel %vm781, %v647, %v780
        %vm783 = vcmp.eq.f32.partialorder %v647, 0.0
        %v784 = vand.u32 %v647, 2147483648
        %v785 = vsel %vm783, %v784, %v782
        %v786 = vrsqrt.pop %v650
        %v787 = vmul.f32 %v786, %v650
        %v788 = vmul.f32 %v787, %v786
        %v789 = vmul.f32 0.5, %v788
        %v790 = vsub.f32 1.5, %v789
        %v791 = vmul.f32 %v786, %v790
        %v792 = vmul.f32 %v650, %v791
        %vm793 = vcmp.eq.f32.partialorder %v650, inf
        %v794 = vsel %vm793, %v650, %v792
        %vm795 = vcmp.eq.f32.partialorder %v650, 0.0
        %v796 = vand.u32 %v650, 2147483648
        %v797 = vsel %vm795, %v796, %v794
        %v798 = vrsqrt.pop %v653
        %v799 = vmul.f32 %v798, %v653
        %v800 = vmul.f32 %v799, %v798
        %v801 = vmul.f32 0.5, %v800
        %v802 = vsub.f32 1.5, %v801
        %v803 = vmul.f32 %v798, %v802
        %v804 = vmul.f32 %v653, %v803
        %vm805 = vcmp.eq.f32.partialorder %v653, inf
        %v806 = vsel %vm805, %v653, %v804
        %vm807 = vcmp.eq.f32.partialorder %v653, 0.0
        %v808 = vand.u32 %v653, 2147483648
        %v809 = vsel %vm807, %v808, %v806
        %v810 = vrsqrt.pop %v656
        %v811 = vmul.f32 %v810, %v656
        %v812 = vmul.f32 %v811, %v810
        %v813 = vmul.f32 0.5, %v812
        %v814 = vsub.f32 1.5, %v813
        %v815 = vmul.f32 %v810, %v814
        %v816 = vmul.f32 %v656, %v815
        %vm817 = vcmp.eq.f32.partialorder %v656, inf
        %v818 = vsel %vm817, %v656, %v816
        %vm819 = vcmp.eq.f32.partialorder %v656, 0.0
        %v820 = vand.u32 %v656, 2147483648
        %v821 = vsel %vm819, %v820, %v818
        %v822 = vrsqrt.pop %v659
        %v823 = vmul.f32 %v822, %v659
        %v824 = vmul.f32 %v823, %v822
        %v825 = vmul.f32 0.5, %v824
        %v826 = vsub.f32 1.5, %v825
        %v827 = vmul.f32 %v822, %v826
        %v828 = vmul.f32 %v659, %v827
        %vm829 = vcmp.eq.f32.partialorder %v659, inf
        %v830 = vsel %vm829, %v659, %v828
        %vm831 = vcmp.eq.f32.partialorder %v659, 0.0
        %v832 = vand.u32 %v659, 2147483648
        %v833 = vsel %vm831, %v832, %v830
        %v834 = vrsqrt.pop %v662
        %v835 = vmul.f32 %v834, %v662
        %v836 = vmul.f32 %v835, %v834
        %v837 = vmul.f32 0.5, %v836
        %v838 = vsub.f32 1.5, %v837
        %v839 = vmul.f32 %v834, %v838
        %v840 = vmul.f32 %v662, %v839
        %vm841 = vcmp.eq.f32.partialorder %v662, inf
        %v842 = vsel %vm841, %v662, %v840
        %vm843 = vcmp.eq.f32.partialorder %v662, 0.0
        %v844 = vand.u32 %v662, 2147483648
        %v845 = vsel %vm843, %v844, %v842
        %v846 = vrsqrt.pop %v665
        %v847 = vmul.f32 %v846, %v665
        %v848 = vmul.f32 %v847, %v846
        %v849 = vmul.f32 0.5, %v848
        %v850 = vsub.f32 1.5, %v849
        %v851 = vmul.f32 %v846, %v850
        %v852 = vmul.f32 %v665, %v851
        %vm853 = vcmp.eq.f32.partialorder %v665, inf
        %v854 = vsel %vm853, %v665, %v852
        %vm855 = vcmp.eq.f32.partialorder %v665, 0.0
        %v856 = vand.u32 %v665, 2147483648
        %v857 = vsel %vm855, %v856, %v854
        %874 = vrot.lane.b32.xlu0 %v601, 96
        %v875 = vpop.permute.xlu0 %874
        %876 = vrot.lane.b32.xlu0 %v602, 96
        %v877 = vpop.permute.xlu0 %876
        %878 = vrot.lane.b32.xlu0 %v603, 96
        %v879 = vpop.permute.xlu0 %878
        %880 = vrot.lane.b32.xlu0 %v604, 96
        %v881 = vpop.permute.xlu0 %880
        %882 = vrot.lane.b32.xlu0 %v605, 96
        %v883 = vpop.permute.xlu0 %882
        %884 = vrot.lane.b32.xlu0 %v606, 96
        %v885 = vpop.permute.xlu0 %884
        %886 = vrot.lane.b32.xlu0 %v607, 96
        %v887 = vpop.permute.xlu0 %886
        %888 = vrot.lane.b32.xlu0 %v608, 96
        %v889 = vpop.permute.xlu0 %888
        %890 = vrot.lane.b32.xlu0 %v609, 96
        %v891 = vpop.permute.xlu0 %890
        %892 = vrot.lane.b32.xlu0 %v610, 96
        %v893 = vpop.permute.xlu0 %892
        %894 = vrot.lane.b32.xlu0 %v611, 96
        %v895 = vpop.permute.xlu0 %894
        %896 = vrot.lane.b32.xlu0 %v612, 96
        %v897 = vpop.permute.xlu0 %896
        %898 = vrot.lane.b32.xlu0 %v613, 96
        %v899 = vpop.permute.xlu0 %898
        %900 = vrot.lane.b32.xlu0 %v614, 96
        %v901 = vpop.permute.xlu0 %900
        %902 = vrot.lane.b32.xlu0 %v615, 96
        %v903 = vpop.permute.xlu0 %902
        %904 = vrot.lane.b32.xlu0 %v616, 96
        %v905 = vpop.permute.xlu0 %904
        %vm922 = vcmask 48128
        %v923 = vsel %vm922, %v875, 0.0
        %924 = vadd.xlane.f32.xlu0 %v923
        %v925 = vpop.xlane.xlu0 %924
        %v926 = vsel %vm922, %v877, 0.0
        %927 = vadd.xlane.f32.xlu0 %v926
        %v928 = vpop.xlane.xlu0 %927
        %v929 = vsel %vm922, %v879, 0.0
        %930 = vadd.xlane.f32.xlu0 %v929
        %v931 = vpop.xlane.xlu0 %930
        %v932 = vsel %vm922, %v881, 0.0
        %933 = vadd.xlane.f32.xlu0 %v932
        %v934 = vpop.xlane.xlu0 %933
        %v935 = vsel %vm922, %v883, 0.0
        %936 = vadd.xlane.f32.xlu0 %v935
        %v937 = vpop.xlane.xlu0 %936
        %v938 = vsel %vm922, %v885, 0.0
        %939 = vadd.xlane.f32.xlu0 %v938
        %v940 = vpop.xlane.xlu0 %939
        %v941 = vsel %vm922, %v887, 0.0
        %942 = vadd.xlane.f32.xlu0 %v941
        %v943 = vpop.xlane.xlu0 %942
        %v944 = vsel %vm922, %v889, 0.0
        %945 = vadd.xlane.f32.xlu0 %v944
        %v946 = vpop.xlane.xlu0 %945
        %v947 = vsel %vm922, %v891, 0.0
        %948 = vadd.xlane.f32.xlu0 %v947
        %v949 = vpop.xlane.xlu0 %948
        %v950 = vsel %vm922, %v893, 0.0
        %951 = vadd.xlane.f32.xlu0 %v950
        %v952 = vpop.xlane.xlu0 %951
        %v953 = vsel %vm922, %v895, 0.0
        %954 = vadd.xlane.f32.xlu0 %v953
        %v955 = vpop.xlane.xlu0 %954
        %v956 = vsel %vm922, %v897, 0.0
        %957 = vadd.xlane.f32.xlu0 %v956
        %v958 = vpop.xlane.xlu0 %957
        %v959 = vsel %vm922, %v899, 0.0
        %960 = vadd.xlane.f32.xlu0 %v959
        %v961 = vpop.xlane.xlu0 %960
        %v962 = vsel %vm922, %v901, 0.0
        %963 = vadd.xlane.f32.xlu0 %v962
        %v964 = vpop.xlane.xlu0 %963
        %v965 = vsel %vm922, %v903, 0.0
        %966 = vadd.xlane.f32.xlu0 %v965
        %v967 = vpop.xlane.xlu0 %966
        %v968 = vsel %vm922, %v905, 0.0
        %969 = vadd.xlane.f32.xlu0 %v968
        %v970 = vpop.xlane.xlu0 %969
        %v971 = vrsqrt.pop %v925
        %v972 = vmul.f32 %v971, %v925
        %v973 = vmul.f32 %v972, %v971
        %v974 = vmul.f32 0.5, %v973
        %v975 = vsub.f32 1.5, %v974
        %v976 = vmul.f32 %v971, %v975
        %v977 = vmul.f32 %v925, %v976
        %vm978 = vcmp.eq.f32.partialorder %v925, inf
        %v979 = vsel %vm978, %v925, %v977
        %vm980 = vcmp.eq.f32.partialorder %v925, 0.0
        %v981 = vand.u32 %v925, 2147483648
        %v982 = vsel %vm980, %v981, %v979
        %v983 = vrsqrt.pop %v928
        %v984 = vmul.f32 %v983, %v928
        %v985 = vmul.f32 %v984, %v983
        %v986 = vmul.f32 0.5, %v985
        %v987 = vsub.f32 1.5, %v986
        %v988 = vmul.f32 %v983, %v987
        %v989 = vmul.f32 %v928, %v988
        %vm990 = vcmp.eq.f32.partialorder %v928, inf
        %v991 = vsel %vm990, %v928, %v989
        %vm992 = vcmp.eq.f32.partialorder %v928, 0.0
        %v993 = vand.u32 %v928, 2147483648
        %v994 = vsel %vm992, %v993, %v991
        %v995 = vrsqrt.pop %v931
        %v996 = vmul.f32 %v995, %v931
        %v997 = vmul.f32 %v996, %v995
        %v998 = vmul.f32 0.5, %v997
        %v999 = vsub.f32 1.5, %v998
        %v1000 = vmul.f32 %v995, %v999
        %v1001 = vmul.f32 %v931, %v1000
        %vm1002 = vcmp.eq.f32.partialorder %v931, inf
        %v1003 = vsel %vm1002, %v931, %v1001
        %vm1004 = vcmp.eq.f32.partialorder %v931, 0.0
        %v1005 = vand.u32 %v931, 2147483648
        %v1006 = vsel %vm1004, %v1005, %v1003
        %v1007 = vrsqrt.pop %v934
        %v1008 = vmul.f32 %v1007, %v934
        %v1009 = vmul.f32 %v1008, %v1007
        %v1010 = vmul.f32 0.5, %v1009
        %v1011 = vsub.f32 1.5, %v1010
        %v1012 = vmul.f32 %v1007, %v1011
        %v1013 = vmul.f32 %v934, %v1012
        %vm1014 = vcmp.eq.f32.partialorder %v934, inf
        %v1015 = vsel %vm1014, %v934, %v1013
        %vm1016 = vcmp.eq.f32.partialorder %v934, 0.0
        %v1017 = vand.u32 %v934, 2147483648
        %v1018 = vsel %vm1016, %v1017, %v1015
        %v1019 = vrsqrt.pop %v937
        %v1020 = vmul.f32 %v1019, %v937
        %v1021 = vmul.f32 %v1020, %v1019
        %v1022 = vmul.f32 0.5, %v1021
        %v1023 = vsub.f32 1.5, %v1022
        %v1024 = vmul.f32 %v1019, %v1023
        %v1025 = vmul.f32 %v937, %v1024
        %vm1026 = vcmp.eq.f32.partialorder %v937, inf
        %v1027 = vsel %vm1026, %v937, %v1025
        %vm1028 = vcmp.eq.f32.partialorder %v937, 0.0
        %v1029 = vand.u32 %v937, 2147483648
        %v1030 = vsel %vm1028, %v1029, %v1027
        %v1031 = vrsqrt.pop %v940
        %v1032 = vmul.f32 %v1031, %v940
        %v1033 = vmul.f32 %v1032, %v1031
        %v1034 = vmul.f32 0.5, %v1033
        %v1035 = vsub.f32 1.5, %v1034
        %v1036 = vmul.f32 %v1031, %v1035
        %v1037 = vmul.f32 %v940, %v1036
        %vm1038 = vcmp.eq.f32.partialorder %v940, inf
        %v1039 = vsel %vm1038, %v940, %v1037
        %vm1040 = vcmp.eq.f32.partialorder %v940, 0.0
        %v1041 = vand.u32 %v940, 2147483648
        %v1042 = vsel %vm1040, %v1041, %v1039
        %v1043 = vrsqrt.pop %v943
        %v1044 = vmul.f32 %v1043, %v943
        %v1045 = vmul.f32 %v1044, %v1043
        %v1046 = vmul.f32 0.5, %v1045
        %v1047 = vsub.f32 1.5, %v1046
        %v1048 = vmul.f32 %v1043, %v1047
        %v1049 = vmul.f32 %v943, %v1048
        %vm1050 = vcmp.eq.f32.partialorder %v943, inf
        %v1051 = vsel %vm1050, %v943, %v1049
        %vm1052 = vcmp.eq.f32.partialorder %v943, 0.0
        %v1053 = vand.u32 %v943, 2147483648
        %v1054 = vsel %vm1052, %v1053, %v1051
        %v1055 = vrsqrt.pop %v946
        %v1056 = vmul.f32 %v1055, %v946
        %v1057 = vmul.f32 %v1056, %v1055
        %v1058 = vmul.f32 0.5, %v1057
        %v1059 = vsub.f32 1.5, %v1058
        %v1060 = vmul.f32 %v1055, %v1059
        %v1061 = vmul.f32 %v946, %v1060
        %vm1062 = vcmp.eq.f32.partialorder %v946, inf
        %v1063 = vsel %vm1062, %v946, %v1061
        %vm1064 = vcmp.eq.f32.partialorder %v946, 0.0
        %v1065 = vand.u32 %v946, 2147483648
        %v1066 = vsel %vm1064, %v1065, %v1063
        %v1067 = vrsqrt.pop %v949
        %v1068 = vmul.f32 %v1067, %v949
        %v1069 = vmul.f32 %v1068, %v1067
        %v1070 = vmul.f32 0.5, %v1069
        %v1071 = vsub.f32 1.5, %v1070
        %v1072 = vmul.f32 %v1067, %v1071
        %v1073 = vmul.f32 %v949, %v1072
        %vm1074 = vcmp.eq.f32.partialorder %v949, inf
        %v1075 = vsel %vm1074, %v949, %v1073
        %vm1076 = vcmp.eq.f32.partialorder %v949, 0.0
        %v1077 = vand.u32 %v949, 2147483648
        %v1078 = vsel %vm1076, %v1077, %v1075
        %v1079 = vrsqrt.pop %v952
        %v1080 = vmul.f32 %v1079, %v952
        %v1081 = vmul.f32 %v1080, %v1079
        %v1082 = vmul.f32 0.5, %v1081
        %v1083 = vsub.f32 1.5, %v1082
        %v1084 = vmul.f32 %v1079, %v1083
        %v1085 = vmul.f32 %v952, %v1084
        %vm1086 = vcmp.eq.f32.partialorder %v952, inf
        %v1087 = vsel %vm1086, %v952, %v1085
        %vm1088 = vcmp.eq.f32.partialorder %v952, 0.0
        %v1089 = vand.u32 %v952, 2147483648
        %v1090 = vsel %vm1088, %v1089, %v1087
        %v1091 = vrsqrt.pop %v955
        %v1092 = vmul.f32 %v1091, %v955
        %v1093 = vmul.f32 %v1092, %v1091
        %v1094 = vmul.f32 0.5, %v1093
        %v1095 = vsub.f32 1.5, %v1094
        %v1096 = vmul.f32 %v1091, %v1095
        %v1097 = vmul.f32 %v955, %v1096
        %vm1098 = vcmp.eq.f32.partialorder %v955, inf
        %v1099 = vsel %vm1098, %v955, %v1097
        %vm1100 = vcmp.eq.f32.partialorder %v955, 0.0
        %v1101 = vand.u32 %v955, 2147483648
        %v1102 = vsel %vm1100, %v1101, %v1099
        %v1103 = vrsqrt.pop %v958
        %v1104 = vmul.f32 %v1103, %v958
        %v1105 = vmul.f32 %v1104, %v1103
        %v1106 = vmul.f32 0.5, %v1105
        %v1107 = vsub.f32 1.5, %v1106
        %v1108 = vmul.f32 %v1103, %v1107
        %v1109 = vmul.f32 %v958, %v1108
        %vm1110 = vcmp.eq.f32.partialorder %v958, inf
        %v1111 = vsel %vm1110, %v958, %v1109
        %vm1112 = vcmp.eq.f32.partialorder %v958, 0.0
        %v1113 = vand.u32 %v958, 2147483648
        %v1114 = vsel %vm1112, %v1113, %v1111
        %v1115 = vrsqrt.pop %v961
        %v1116 = vmul.f32 %v1115, %v961
        %v1117 = vmul.f32 %v1116, %v1115
        %v1118 = vmul.f32 0.5, %v1117
        %v1119 = vsub.f32 1.5, %v1118
        %v1120 = vmul.f32 %v1115, %v1119
        %v1121 = vmul.f32 %v961, %v1120
        %vm1122 = vcmp.eq.f32.partialorder %v961, inf
        %v1123 = vsel %vm1122, %v961, %v1121
        %vm1124 = vcmp.eq.f32.partialorder %v961, 0.0
        %v1125 = vand.u32 %v961, 2147483648
        %v1126 = vsel %vm1124, %v1125, %v1123
        %v1127 = vrsqrt.pop %v964
        %v1128 = vmul.f32 %v1127, %v964
        %v1129 = vmul.f32 %v1128, %v1127
        %v1130 = vmul.f32 0.5, %v1129
        %v1131 = vsub.f32 1.5, %v1130
        %v1132 = vmul.f32 %v1127, %v1131
        %v1133 = vmul.f32 %v964, %v1132
        %vm1134 = vcmp.eq.f32.partialorder %v964, inf
        %v1135 = vsel %vm1134, %v964, %v1133
        %vm1136 = vcmp.eq.f32.partialorder %v964, 0.0
        %v1137 = vand.u32 %v964, 2147483648
        %v1138 = vsel %vm1136, %v1137, %v1135
        %v1139 = vrsqrt.pop %v967
        %v1140 = vmul.f32 %v1139, %v967
        %v1141 = vmul.f32 %v1140, %v1139
        %v1142 = vmul.f32 0.5, %v1141
        %v1143 = vsub.f32 1.5, %v1142
        %v1144 = vmul.f32 %v1139, %v1143
        %v1145 = vmul.f32 %v967, %v1144
        %vm1146 = vcmp.eq.f32.partialorder %v967, inf
        %v1147 = vsel %vm1146, %v967, %v1145
        %vm1148 = vcmp.eq.f32.partialorder %v967, 0.0
        %v1149 = vand.u32 %v967, 2147483648
        %v1150 = vsel %vm1148, %v1149, %v1147
        %v1151 = vrsqrt.pop %v970
        %v1152 = vmul.f32 %v1151, %v970
        %v1153 = vmul.f32 %v1152, %v1151
        %v1154 = vmul.f32 0.5, %v1153
        %v1155 = vsub.f32 1.5, %v1154
        %v1156 = vmul.f32 %v1151, %v1155
        %v1157 = vmul.f32 %v970, %v1156
        %vm1158 = vcmp.eq.f32.partialorder %v970, inf
        %v1159 = vsel %vm1158, %v970, %v1157
        %vm1160 = vcmp.eq.f32.partialorder %v970, 0.0
        %v1161 = vand.u32 %v970, 2147483648
        %v1162 = vsel %vm1160, %v1161, %v1159
        %v1163 = vpack.c.bf16 %v586, %v585
        %v1164 = vpack.c.bf16 %v588, %v587
        %v1165 = vpack.c.bf16 %v590, %v589
        %v1166 = vpack.c.bf16 %v592, %v591
        %v1167 = vpack.c.bf16 %v594, %v593
        %v1168 = vpack.c.bf16 %v596, %v595
        %v1169 = vpack.c.bf16 %v598, %v597
        %v1170 = vpack.c.bf16 %v600, %v599
        %v1171 = vld [vmem:[%s3] sm:$0xf]
        %v1172 = vld [vmem:[%s3 + $0x4] sm:$0xf]
        %v1173 = vld [vmem:[%s3 + $0x8] sm:$0xf]
        %v1174 = vld [vmem:[%s3 + $0xc] sm:$0xf]
        %v1175 = vld [vmem:[%s3 + $0x10] sm:$0x7]
        %v1181 = vunpack.c.l.b16 %v1171
        %v1182 = vunpack.c.l.b16 %v1172
        %v1183 = vunpack.c.l.b16 %v1173
        %v1184 = vunpack.c.l.b16 %v1174
        %v1185 = vunpack.c.l.b16 %v1175
        %v1186 = vpack.c.b16 %v1182, %v1181
        %v1187 = vpack.c.b16 %v1184, %v1183
        %v1188 = vpack.c.b16 %v1185, %v1185
        %vm1191 = vcmask 310272
        %v1193 = vsel %vm1191, %v1163, 0
        %v1196 = vsel %vm1191, %v1164, 0
        %v1199 = vsel %vm1191, %v1165, 0
        %v1202 = vsel %vm1191, %v1166, 0
        %v1205 = vsel %vm1191, %v1167, 0
        %v1208 = vsel %vm1191, %v1168, 0
        %v1211 = vsel %vm1191, %v1169, 0
        %v1214 = vsel %vm1191, %v1170, 0
        %vm1216 = vcmask 1042432
        %v1218 = vsel %vm1216, %v1188, 0
        %1220 = vmatpush.bf16.msra.mxu0 0
        %1221 = vmatpush.bf16.msra.mxu0 0
        %1222 = vmatpush.bf16.msra.mxu0 0
        %1223 = vmatpush.bf16.msra.mxu0 0
        %1224 = vmatpush.bf16.msra.mxu0 0
        %1225 = vmatpush.bf16.msra.mxu0 %v1218
        %1226 = vmatpush.bf16.msra.mxu0 %v1187
        %1227 = vmatpush.bf16.msra.mxu0 %v1186
        %1228 = vmatmul.bf16.gmra.mxu0 %v1193
        %v1229 = vpop.f32.mrf.mxu0
        %v1230 = vadd.f32 0.0, %v1229
        %v1231 = vpop.f32.mrf.mxu0
        %v1232 = vadd.f32 0.0, %v1231
        %1233 = vmatmul.bf16.gmra.mxu0 %v1196
        %v1234 = vpop.f32.mrf.mxu0
        %v1235 = vadd.f32 0.0, %v1234
        %v1236 = vpop.f32.mrf.mxu0
        %v1237 = vadd.f32 0.0, %v1236
        %1238 = vmatmul.bf16.gmra.mxu0 %v1199
        %v1239 = vpop.f32.mrf.mxu0
        %v1240 = vadd.f32 0.0, %v1239
        %v1241 = vpop.f32.mrf.mxu0
        %v1242 = vadd.f32 0.0, %v1241
        %1243 = vmatmul.bf16.gmra.mxu0 %v1202
        %v1244 = vpop.f32.mrf.mxu0
        %v1245 = vadd.f32 0.0, %v1244
        %v1246 = vpop.f32.mrf.mxu0
        %v1247 = vadd.f32 0.0, %v1246
        %1248 = vmatmul.bf16.gmra.mxu0 %v1205
        %v1249 = vpop.f32.mrf.mxu0
        %v1250 = vadd.f32 0.0, %v1249
        %v1251 = vpop.f32.mrf.mxu0
        %v1252 = vadd.f32 0.0, %v1251
        %1253 = vmatmul.bf16.gmra.mxu0 %v1208
        %v1254 = vpop.f32.mrf.mxu0
        %v1255 = vadd.f32 0.0, %v1254
        %v1256 = vpop.f32.mrf.mxu0
        %v1257 = vadd.f32 0.0, %v1256
        %1258 = vmatmul.bf16.gmra.mxu0 %v1211
        %v1259 = vpop.f32.mrf.mxu0
        %v1260 = vadd.f32 0.0, %v1259
        %v1261 = vpop.f32.mrf.mxu0
        %v1262 = vadd.f32 0.0, %v1261
        %1263 = vmatmul.bf16.gmra.mxu0 %v1214
        %v1264 = vpop.f32.mrf.mxu0
        %v1265 = vadd.f32 0.0, %v1264
        %v1266 = vpop.f32.mrf.mxu0
        %v1267 = vadd.f32 0.0, %v1266
        %1268 = vdwg.mxu0
        %1285 = vrot.lane.b32.xlu0 %v1230, 48
        %v1286 = vpop.permute.xlu0 %1285
        %1287 = vrot.lane.b32.xlu0 %v1232, 48
        %v1288 = vpop.permute.xlu0 %1287
        %1289 = vrot.lane.b32.xlu0 %v1235, 48
        %v1290 = vpop.permute.xlu0 %1289
        %1291 = vrot.lane.b32.xlu0 %v1237, 48
        %v1292 = vpop.permute.xlu0 %1291
        %1293 = vrot.lane.b32.xlu0 %v1240, 48
        %v1294 = vpop.permute.xlu0 %1293
        %1295 = vrot.lane.b32.xlu0 %v1242, 48
        %v1296 = vpop.permute.xlu0 %1295
        %1297 = vrot.lane.b32.xlu0 %v1245, 48
        %v1298 = vpop.permute.xlu0 %1297
        %1299 = vrot.lane.b32.xlu0 %v1247, 48
        %v1300 = vpop.permute.xlu0 %1299
        %1301 = vrot.lane.b32.xlu0 %v1250, 48
        %v1302 = vpop.permute.xlu0 %1301
        %1303 = vrot.lane.b32.xlu0 %v1252, 48
        %v1304 = vpop.permute.xlu0 %1303
        %1305 = vrot.lane.b32.xlu0 %v1255, 48
        %v1306 = vpop.permute.xlu0 %1305
        %1307 = vrot.lane.b32.xlu0 %v1257, 48
        %v1308 = vpop.permute.xlu0 %1307
        %1309 = vrot.lane.b32.xlu0 %v1260, 48
        %v1310 = vpop.permute.xlu0 %1309
        %1311 = vrot.lane.b32.xlu0 %v1262, 48
        %v1312 = vpop.permute.xlu0 %1311
        %1313 = vrot.lane.b32.xlu0 %v1265, 48
        %v1314 = vpop.permute.xlu0 %1313
        %1315 = vrot.lane.b32.xlu0 %v1267, 48
        %v1316 = vpop.permute.xlu0 %1315
        %v1333 = vadd.f32 %v405, %v1286
        %v1334 = vadd.f32 %v407, %v1288
        %v1335 = vadd.f32 %v410, %v1290
        %v1336 = vadd.f32 %v412, %v1292
        %v1337 = vadd.f32 %v415, %v1294
        %v1338 = vadd.f32 %v417, %v1296
        %v1339 = vadd.f32 %v420, %v1298
        %v1340 = vadd.f32 %v422, %v1300
        %v1341 = vadd.f32 %v425, %v1302
        %v1342 = vadd.f32 %v427, %v1304
        %v1343 = vadd.f32 %v430, %v1306
        %v1344 = vadd.f32 %v432, %v1308
        %v1345 = vadd.f32 %v435, %v1310
        %v1346 = vadd.f32 %v437, %v1312
        %v1347 = vadd.f32 %v440, %v1314
        %v1348 = vadd.f32 %v442, %v1316
        %v1349 = vmax.f32 %v1333, 0.0
        %v1350 = vmax.f32 %v1334, 0.0
        %v1351 = vmax.f32 %v1335, 0.0
        %v1352 = vmax.f32 %v1336, 0.0
        %v1353 = vmax.f32 %v1337, 0.0
        %v1354 = vmax.f32 %v1338, 0.0
        %v1355 = vmax.f32 %v1339, 0.0
        %v1356 = vmax.f32 %v1340, 0.0
        %v1357 = vmax.f32 %v1341, 0.0
        %v1358 = vmax.f32 %v1342, 0.0
        %v1359 = vmax.f32 %v1343, 0.0
        %v1360 = vmax.f32 %v1344, 0.0
        %v1361 = vmax.f32 %v1345, 0.0
        %v1362 = vmax.f32 %v1346, 0.0
        %v1363 = vmax.f32 %v1347, 0.0
        %v1364 = vmax.f32 %v1348, 0.0
        %v1365 = vpack.c.bf16 %v1350, %v1349
        %v1366 = vpack.c.bf16 %v1352, %v1351
        %v1367 = vpack.c.bf16 %v1354, %v1353
        %v1368 = vpack.c.bf16 %v1356, %v1355
        %v1369 = vpack.c.bf16 %v1358, %v1357
        %v1370 = vpack.c.bf16 %v1360, %v1359
        %v1371 = vpack.c.bf16 %v1362, %v1361
        %v1372 = vpack.c.bf16 %v1364, %v1363
        %v1373 = vld [vmem:[%s4] sm:$0xf]
        %v1374 = vld [vmem:[%s4 + $0x4] sm:$0xf]
        %v1375 = vld [vmem:[%s4 + $0x8] sm:$0xf]
        %v1376 = vld [vmem:[%s4 + $0xc] sm:$0xf]
        %v1377 = vld [vmem:[%s4 + $0x10] sm:$0xf]
        %v1378 = vld [vmem:[%s4 + $0x14] sm:$0xf]
        %v1379 = vld [vmem:[%s4 + $0x18] sm:$0xf]
        %v1380 = vld [vmem:[%s4 + $0x1c] sm:$0xf]
        %1389 = vrot.lane.b32.xlu0 %v1365, 80
        %v1390 = vpop.permute.xlu0 %1389
        %1391 = vrot.lane.b32.xlu0 %v1366, 80
        %v1392 = vpop.permute.xlu0 %1391
        %1393 = vrot.lane.b32.xlu0 %v1367, 80
        %v1394 = vpop.permute.xlu0 %1393
        %1395 = vrot.lane.b32.xlu0 %v1368, 80
        %v1396 = vpop.permute.xlu0 %1395
        %1397 = vrot.lane.b32.xlu0 %v1369, 80
        %v1398 = vpop.permute.xlu0 %1397
        %1399 = vrot.lane.b32.xlu0 %v1370, 80
        %v1400 = vpop.permute.xlu0 %1399
        %1401 = vrot.lane.b32.xlu0 %v1371, 80
        %v1402 = vpop.permute.xlu0 %1401
        %1403 = vrot.lane.b32.xlu0 %v1372, 80
        %v1404 = vpop.permute.xlu0 %1403
        %v1413 = vunpack.c.l.b16 %v1373
        %v1414 = vunpack.c.l.b16 %v1374
        %v1415 = vunpack.c.l.b16 %v1375
        %v1416 = vunpack.c.l.b16 %v1376
        %v1417 = vunpack.c.l.b16 %v1377
        %v1418 = vunpack.c.l.b16 %v1378
        %v1419 = vunpack.c.l.b16 %v1379
        %v1420 = vunpack.c.l.b16 %v1380
        %v1421 = vpack.c.b16 %v1414, %v1413
        %v1422 = vpack.c.b16 %v1416, %v1415
        %v1423 = vpack.c.b16 %v1418, %v1417
        %v1424 = vpack.c.b16 %v1420, %v1419
        %vm1429 = vcmask 523264
        %v1431 = vsel %vm1429, %v1390, 0
        %v1434 = vsel %vm1429, %v1392, 0
        %v1437 = vsel %vm1429, %v1394, 0
        %v1440 = vsel %vm1429, %v1396, 0
        %v1443 = vsel %vm1429, %v1398, 0
        %v1446 = vsel %vm1429, %v1400, 0
        %v1449 = vsel %vm1429, %v1402, 0
        %v1452 = vsel %vm1429, %v1404, 0
        %1454 = vmatpush.bf16.msra.mxu0 0
        %1455 = vmatpush.bf16.msra.mxu0 0
        %1456 = vmatpush.bf16.msra.mxu0 0
        %1457 = vmatpush.bf16.msra.mxu0 0
        %1458 = vmatpush.bf16.msra.mxu0 %v1424
        %1459 = vmatpush.bf16.msra.mxu0 %v1423
        %1460 = vmatpush.bf16.msra.mxu0 %v1422
        %1461 = vmatpush.bf16.msra.mxu0 %v1421
        %1462 = vmatmul.bf16.gmra.mxu0 %v1431
        %v1463 = vpop.f32.mrf.mxu0
        %v1464 = vadd.f32 0.0, %v1463
        %v1465 = vpop.f32.mrf.mxu0
        %v1466 = vadd.f32 0.0, %v1465
        %1467 = vmatmul.bf16.gmra.mxu0 %v1434
        %v1468 = vpop.f32.mrf.mxu0
        %v1469 = vadd.f32 0.0, %v1468
        %v1470 = vpop.f32.mrf.mxu0
        %v1471 = vadd.f32 0.0, %v1470
        %1472 = vmatmul.bf16.gmra.mxu0 %v1437
        %v1473 = vpop.f32.mrf.mxu0
        %v1474 = vadd.f32 0.0, %v1473
        %v1475 = vpop.f32.mrf.mxu0
        %v1476 = vadd.f32 0.0, %v1475
        %1477 = vmatmul.bf16.gmra.mxu0 %v1440
        %v1478 = vpop.f32.mrf.mxu0
        %v1479 = vadd.f32 0.0, %v1478
        %v1480 = vpop.f32.mrf.mxu0
        %v1481 = vadd.f32 0.0, %v1480
        %1482 = vmatmul.bf16.gmra.mxu0 %v1443
        %v1483 = vpop.f32.mrf.mxu0
        %v1484 = vadd.f32 0.0, %v1483
        %v1485 = vpop.f32.mrf.mxu0
        %v1486 = vadd.f32 0.0, %v1485
        %1487 = vmatmul.bf16.gmra.mxu0 %v1446
        %v1488 = vpop.f32.mrf.mxu0
        %v1489 = vadd.f32 0.0, %v1488
        %v1490 = vpop.f32.mrf.mxu0
        %v1491 = vadd.f32 0.0, %v1490
        %1492 = vmatmul.bf16.gmra.mxu0 %v1449
        %v1493 = vpop.f32.mrf.mxu0
        %v1494 = vadd.f32 0.0, %v1493
        %v1495 = vpop.f32.mrf.mxu0
        %v1496 = vadd.f32 0.0, %v1495
        %1497 = vmatmul.bf16.gmra.mxu0 %v1452
        %v1498 = vpop.f32.mrf.mxu0
        %v1499 = vadd.f32 0.0, %v1498
        %v1500 = vpop.f32.mrf.mxu0
        %v1501 = vadd.f32 0.0, %v1500
        %1502 = vdwg.mxu0
        %v1503 = vmax.f32 %v1464, 0.0
        %v1504 = vmax.f32 %v1466, 0.0
        %v1505 = vmax.f32 %v1469, 0.0
        %v1506 = vmax.f32 %v1471, 0.0
        %v1507 = vmax.f32 %v1474, 0.0
        %v1508 = vmax.f32 %v1476, 0.0
        %v1509 = vmax.f32 %v1479, 0.0
        %v1510 = vmax.f32 %v1481, 0.0
        %v1511 = vmax.f32 %v1484, 0.0
        %v1512 = vmax.f32 %v1486, 0.0
        %v1513 = vmax.f32 %v1489, 0.0
        %v1514 = vmax.f32 %v1491, 0.0
        %v1515 = vmax.f32 %v1494, 0.0
        %v1516 = vmax.f32 %v1496, 0.0
        %v1517 = vmax.f32 %v1499, 0.0
        %v1518 = vmax.f32 %v1501, 0.0
        %v1519 = vpack.c.bf16 %v1504, %v1503
        %v1520 = vpack.c.bf16 %v1506, %v1505
        %v1521 = vpack.c.bf16 %v1508, %v1507
        %v1522 = vpack.c.bf16 %v1510, %v1509
        %v1523 = vpack.c.bf16 %v1512, %v1511
        %v1524 = vpack.c.bf16 %v1514, %v1513
        %v1525 = vpack.c.bf16 %v1516, %v1515
        %v1526 = vpack.c.bf16 %v1518, %v1517
        %v1527 = vld [vmem:[%s5] sm:$0xf]
        %v1528 = vld [vmem:[%s5 + $0x4] sm:$0xf]
        %v1529 = vld [vmem:[%s5 + $0x8] sm:$0xf]
        %v1530 = vld [vmem:[%s5 + $0xc] sm:$0xf]
        %v1531 = vld [vmem:[%s5 + $0x10] sm:$0xf]
        %v1532 = vld [vmem:[%s5 + $0x14] sm:$0xf]
        %v1533 = vld [vmem:[%s5 + $0x18] sm:$0xf]
        %v1534 = vld [vmem:[%s5 + $0x1c] sm:$0xf]
        %v1543 = vunpack.c.l.b16 %v1527
        %v1544 = vunpack.c.l.b16 %v1528
        %v1545 = vunpack.c.l.b16 %v1529
        %v1546 = vunpack.c.l.b16 %v1530
        %v1547 = vunpack.c.l.b16 %v1531
        %v1548 = vunpack.c.l.b16 %v1532
        %v1549 = vunpack.c.l.b16 %v1533
        %v1550 = vunpack.c.l.b16 %v1534
        %v1551 = vpack.c.b16 %v1544, %v1543
        %v1552 = vpack.c.b16 %v1546, %v1545
        %v1553 = vpack.c.b16 %v1548, %v1547
        %v1554 = vpack.c.b16 %v1550, %v1549
        %v1560 = vsel %vm1429, %v1519, 0
        %v1563 = vsel %vm1429, %v1520, 0
        %v1566 = vsel %vm1429, %v1521, 0
        %v1569 = vsel %vm1429, %v1522, 0
        %v1572 = vsel %vm1429, %v1523, 0
        %v1575 = vsel %vm1429, %v1524, 0
        %v1578 = vsel %vm1429, %v1525, 0
        %v1581 = vsel %vm1429, %v1526, 0
        %1583 = vmatpush.bf16.msra.mxu0 0
        %1584 = vmatpush.bf16.msra.mxu0 0
        %1585 = vmatpush.bf16.msra.mxu0 0
        %1586 = vmatpush.bf16.msra.mxu0 0
        %1587 = vmatpush.bf16.msra.mxu0 %v1554
        %1588 = vmatpush.bf16.msra.mxu0 %v1553
        %1589 = vmatpush.bf16.msra.mxu0 %v1552
        %1590 = vmatpush.bf16.msra.mxu0 %v1551
        %1591 = vmatmul.bf16.gmra.mxu0 %v1560
        %v1592 = vpop.f32.mrf.mxu0
        %v1593 = vadd.f32 0.0, %v1592
        %v1594 = vpop.f32.mrf.mxu0
        %v1595 = vadd.f32 0.0, %v1594
        %1596 = vmatmul.bf16.gmra.mxu0 %v1563
        %v1597 = vpop.f32.mrf.mxu0
        %v1598 = vadd.f32 0.0, %v1597
        %v1599 = vpop.f32.mrf.mxu0
        %v1600 = vadd.f32 0.0, %v1599
        %1601 = vmatmul.bf16.gmra.mxu0 %v1566
        %v1602 = vpop.f32.mrf.mxu0
        %v1603 = vadd.f32 0.0, %v1602
        %v1604 = vpop.f32.mrf.mxu0
        %v1605 = vadd.f32 0.0, %v1604
        %1606 = vmatmul.bf16.gmra.mxu0 %v1569
        %v1607 = vpop.f32.mrf.mxu0
        %v1608 = vadd.f32 0.0, %v1607
        %v1609 = vpop.f32.mrf.mxu0
        %v1610 = vadd.f32 0.0, %v1609
        %1611 = vmatmul.bf16.gmra.mxu0 %v1572
        %v1612 = vpop.f32.mrf.mxu0
        %v1613 = vadd.f32 0.0, %v1612
        %v1614 = vpop.f32.mrf.mxu0
        %v1615 = vadd.f32 0.0, %v1614
        %1616 = vmatmul.bf16.gmra.mxu0 %v1575
        %v1617 = vpop.f32.mrf.mxu0
        %v1618 = vadd.f32 0.0, %v1617
        %v1619 = vpop.f32.mrf.mxu0
        %v1620 = vadd.f32 0.0, %v1619
        %1621 = vmatmul.bf16.gmra.mxu0 %v1578
        %v1622 = vpop.f32.mrf.mxu0
        %v1623 = vadd.f32 0.0, %v1622
        %v1624 = vpop.f32.mrf.mxu0
        %v1625 = vadd.f32 0.0, %v1624
        %1626 = vmatmul.bf16.gmra.mxu0 %v1581
        %v1627 = vpop.f32.mrf.mxu0
        %v1628 = vadd.f32 0.0, %v1627
        %v1629 = vpop.f32.mrf.mxu0
        %v1630 = vadd.f32 0.0, %v1629
        %1631 = vdwg.mxu0
        %vm1632 = vcmp.eq.s32.totalorder %v567, 11
        %vm1633 = vcmp.eq.s32.totalorder %v567, 12
        %v1634 = vsel %vm1633, %v982, %v1593
        %v1635 = vsel %vm1633, %v994, %v1595
        %v1636 = vsel %vm1633, %v1006, %v1598
        %v1637 = vsel %vm1633, %v1018, %v1600
        %v1638 = vsel %vm1633, %v1030, %v1603
        %v1639 = vsel %vm1633, %v1042, %v1605
        %v1640 = vsel %vm1633, %v1054, %v1608
        %v1641 = vsel %vm1633, %v1066, %v1610
        %v1642 = vsel %vm1633, %v1078, %v1613
        %v1643 = vsel %vm1633, %v1090, %v1615
        %v1644 = vsel %vm1633, %v1102, %v1618
        %v1645 = vsel %vm1633, %v1114, %v1620
        %v1646 = vsel %vm1633, %v1126, %v1623
        %v1647 = vsel %vm1633, %v1138, %v1625
        %v1648 = vsel %vm1633, %v1150, %v1628
        %v1649 = vsel %vm1633, %v1162, %v1630
        %v1650 = vsel %vm1632, %v677, %v1634
        %v1651 = vsel %vm1632, %v689, %v1635
        %v1652 = vsel %vm1632, %v701, %v1636
        %v1653 = vsel %vm1632, %v713, %v1637
        %v1654 = vsel %vm1632, %v725, %v1638
        %v1655 = vsel %vm1632, %v737, %v1639
        %v1656 = vsel %vm1632, %v749, %v1640
        %v1657 = vsel %vm1632, %v761, %v1641
        %v1658 = vsel %vm1632, %v773, %v1642
        %v1659 = vsel %vm1632, %v785, %v1643
        %v1660 = vsel %vm1632, %v797, %v1644
        %v1661 = vsel %vm1632, %v809, %v1645
        %v1662 = vsel %vm1632, %v821, %v1646
        %v1663 = vsel %vm1632, %v833, %v1647
        %v1664 = vsel %vm1632, %v845, %v1648
        %v1665 = vsel %vm1632, %v857, %v1649
        %vm1666 = vcmask 130048
        %1667 = vst.msk [vmem:[%s253] sm:$0xff] %vm1666, %v1650
        %1668 = vst.msk [vmem:[%s253 + $0x8] sm:$0xff] %vm1666, %v1651
        %1669 = vst.msk [vmem:[%s253 + $0x10] sm:$0xff] %vm1666, %v1652
        %1670 = vst.msk [vmem:[%s253 + $0x18] sm:$0xff] %vm1666, %v1653
        %1671 = vst.msk [vmem:[%s253 + $0x20] sm:$0xff] %vm1666, %v1654
        %1672 = vst.msk [vmem:[%s253 + $0x28] sm:$0xff] %vm1666, %v1655
        %1673 = vst.msk [vmem:[%s253 + $0x30] sm:$0xff] %vm1666, %v1656
        %1674 = vst.msk [vmem:[%s253 + $0x38] sm:$0xff] %vm1666, %v1657
        %1675 = vst.msk [vmem:[%s253 + $0x40] sm:$0xff] %vm1666, %v1658
        %1676 = vst.msk [vmem:[%s253 + $0x48] sm:$0xff] %vm1666, %v1659
        %1677 = vst.msk [vmem:[%s253 + $0x50] sm:$0xff] %vm1666, %v1660
        %1678 = vst.msk [vmem:[%s253 + $0x58] sm:$0xff] %vm1666, %v1661
        %1679 = vst.msk [vmem:[%s253 + $0x60] sm:$0xff] %vm1666, %v1662
        %1680 = vst.msk [vmem:[%s253 + $0x68] sm:$0xff] %vm1666, %v1663
        %1681 = vst.msk [vmem:[%s253 + $0x70] sm:$0xff] %vm1666, %v1664
        %1682 = vst.msk [vmem:[%s253 + $0x78] sm:$0xff] %vm1666, %v1665
        %s1683 = sand.u32 %s156, 1
        %s1684 = sand.u32 %s156, 1
        %s1685 = smul.addr %s1684, 128
        %s1686 = scalar_lea.vmem [#allocation2], %s1685
        // Predicated region
        $region45: #{motion_network_forward.1} parent=43 // pred_check
          %p1687 = pneg %p166
        $region46: #{motion_network_forward.1} parent=43 // pred_check_branch
          %1689 = sbr.rel (%p1687) target = $region48
        $region47: #{motion_network_forward.1} parent=43 // pred_region
          %s1690 = smul.u32 16, %s17
          %s1691 = ssub.s32 38, %s1690
          %p1692 = scmp.lt.s32.totalorder %s1691, 16
          %s1693 = scalar_select %p1692, %s1691, 16
          %s1694 = smul.u32 8, %s1693
          %p1695 = scmp.ne.s32.totalorder 0, %s1694
          %s1696 = smul.addr %s1690, 8
          %s1697 = scalar_lea.vmem %s6, %s1696
          // Predicated region
          $region49: #{motion_network_forward.1} parent=47 // pred_check
            %p1698 = pneg %p1695
          $region50: #{motion_network_forward.1} parent=47 // pred_check_branch
            %1700 = sbr.rel (%p1698) target = $region52
          $region51: #{motion_network_forward.1} parent=47 // pred_region
            // Predicated region
            $region53: #{motion_network_forward.1} parent=51 // pred_check
              _
            $region54: #{motion_network_forward.1} parent=51 // pred_check_branch
              %1702 = sbr.rel (0) target = $region56
            $region55: #{motion_network_forward.1} parent=51 // pred_region
              // Predicated region
              $region75: #{motion_network_forward.1} parent=55 // pred_check
                _
              $region76: #{motion_network_forward.1} parent=55 // pred_check_branch
                %1782 = sbr.rel (0) target = $region78
              $region77: #{motion_network_forward.1} parent=55 // pred_region
                %s1783 = sshrl.u32 %s1693, 4
                // While loop
                $region79: #{motion_network_forward.1} parent=77 // loop_pre_header
                  _
                $region80: #{motion_network_forward.1} parent=77 // loop_header
                  %s1785 = sphi 0, %s1787
                  %p1786 = scmp.ge.s32.totalorder %s1785, %s1783
                  %s1790 = sphi 0, %s1827
                  %s1791 = sphi %s1686, %s1830
                  %s1792 = sphi %s1697, %s1831
                $region81: #{motion_network_forward.1} parent=77 // loop_header_branch
                  %1789 = sbr.rel (%p1786) target = $region85
                $region82: #{motion_network_forward.1} parent=77 // loop_body
                  %v1793 = vld [vmem:[%s1791] sm:$0xff]
                  %1794 = vst [vmem:[%s1792] sm:$0xff] %v1793
                  %v1795 = vld [vmem:[%s1791 + $0x8] sm:$0xff]
                  %1796 = vst [vmem:[%s1792 + $0x8] sm:$0xff] %v1795
                  %v1797 = vld [vmem:[%s1791 + $0x10] sm:$0xff]
                  %1798 = vst [vmem:[%s1792 + $0x10] sm:$0xff] %v1797
                  %v1799 = vld [vmem:[%s1791 + $0x18] sm:$0xff]
                  %1800 = vst [vmem:[%s1792 + $0x18] sm:$0xff] %v1799
                  %v1801 = vld [vmem:[%s1791 + $0x20] sm:$0xff]
                  %1802 = vst [vmem:[%s1792 + $0x20] sm:$0xff] %v1801
                  %v1803 = vld [vmem:[%s1791 + $0x28] sm:$0xff]
                  %1804 = vst [vmem:[%s1792 + $0x28] sm:$0xff] %v1803
                  %v1805 = vld [vmem:[%s1791 + $0x30] sm:$0xff]
                  %1806 = vst [vmem:[%s1792 + $0x30] sm:$0xff] %v1805
                  %v1807 = vld [vmem:[%s1791 + $0x38] sm:$0xff]
                  %1808 = vst [vmem:[%s1792 + $0x38] sm:$0xff] %v1807
                  %v1809 = vld [vmem:[%s1791 + $0x40] sm:$0xff]
                  %1810 = vst [vmem:[%s1792 + $0x40] sm:$0xff] %v1809
                  %v1811 = vld [vmem:[%s1791 + $0x48] sm:$0xff]
                  %1812 = vst [vmem:[%s1792 + $0x48] sm:$0xff] %v1811
                  %v1813 = vld [vmem:[%s1791 + $0x50] sm:$0xff]
                  %1814 = vst [vmem:[%s1792 + $0x50] sm:$0xff] %v1813
                  %v1815 = vld [vmem:[%s1791 + $0x58] sm:$0xff]
                  %1816 = vst [vmem:[%s1792 + $0x58] sm:$0xff] %v1815
                  %v1817 = vld [vmem:[%s1791 + $0x60] sm:$0xff]
                  %1818 = vst [vmem:[%s1792 + $0x60] sm:$0xff] %v1817
                  %v1819 = vld [vmem:[%s1791 + $0x68] sm:$0xff]
                  %1820 = vst [vmem:[%s1792 + $0x68] sm:$0xff] %v1819
                  %v1821 = vld [vmem:[%s1791 + $0x70] sm:$0xff]
                  %1822 = vst [vmem:[%s1792 + $0x70] sm:$0xff] %v1821
                  %v1823 = vld [vmem:[%s1791 + $0x78] sm:$0xff]
                  %1824 = vst [vmem:[%s1792 + $0x78] sm:$0xff] %v1823
                  %s1825 = sadd.s32 1, %s1790
                  %p1826 = scmp.ge.s32.totalorder %s1825, %s1783
                  %s1827 = scalar_select %p1826, 0, %s1825
                  %s1828 = smul.u32 %s1827, 128
                  %s1829 = smul.u32 %s1827, 128
                  %s1830 = scalar_lea.vmem %s1686, %s1828 [#allocation2]
                  %s1831 = scalar_lea.vmem %s1697, %s1829
                $region83: #{motion_network_forward.1} parent=77 // loop_footer
                  %s1787 = sadd.s32 %s1785, 1
                $region84: #{motion_network_forward.1} parent=77 // loop_footer_branch
                  %1784 = sbr.rel target = $region80
                $region85: #{motion_network_forward.1} parent=77 // loop_exit
                  _
                %s1832 = sshrl.u32 %s1693, 4
                %s1833 = sand.u32 %s1693, 15
                %s1834 = smul.u32 %s1832, 16
                %s1835 = smul.u32 8, %s1834
                %s1836 = scalar_lea.vmem %s1686, %s1835 [#allocation2]
                %s1837 = smul.u32 8, %s1834
                %s1838 = scalar_lea.vmem %s1697, %s1837
                // While loop
                $region86: #{motion_network_forward.1} parent=77 // loop_pre_header
                  _
                $region87: #{motion_network_forward.1} parent=77 // loop_header
                  %s1840 = sphi 0, %s1842
                  %p1841 = scmp.ge.s32.totalorder %s1840, %s1833
                  %s1845 = sphi 0, %s1852
                  %s1846 = sphi %s1836, %s1855
                  %s1847 = sphi %s1838, %s1856
                $region88: #{motion_network_forward.1} parent=77 // loop_header_branch
                  %1844 = sbr.rel (%p1841) target = $region92
                $region89: #{motion_network_forward.1} parent=77 // loop_body
                  %v1848 = vld [vmem:[%s1846] sm:$0xff]
                  %1849 = vst [vmem:[%s1847] sm:$0xff] %v1848
                  %s1850 = sadd.s32 1, %s1845
                  %p1851 = scmp.ge.s32.totalorder %s1850, %s1833
                  %s1852 = scalar_select %p1851, 0, %s1850
                  %s1853 = smul.u32 %s1852, 8
                  %s1854 = smul.u32 %s1852, 8
                  %s1855 = scalar_lea.vmem %s1836, %s1853 [#allocation2]
                  %s1856 = scalar_lea.vmem %s1838, %s1854
                $region90: #{motion_network_forward.1} parent=77 // loop_footer
                  %s1842 = sadd.s32 %s1840, 1
                $region91: #{motion_network_forward.1} parent=77 // loop_footer_branch
                  %1839 = sbr.rel target = $region87
                $region92: #{motion_network_forward.1} parent=77 // loop_exit
                  _
              $region78: #{motion_network_forward.1} parent=55 // pred_fallthru
                _
              // Predicated region
              $region93: #{motion_network_forward.1} parent=55 // pred_check
                _
              $region94: #{motion_network_forward.1} parent=55 // pred_check_branch
                %1858 = sbr.rel target = $region96
              $region95: #{motion_network_forward.1} parent=55 // pred_region
                _
              $region96: #{motion_network_forward.1} parent=55 // pred_fallthru
                _
            $region56: #{motion_network_forward.1} parent=51 // pred_fallthru
              _
            // Predicated region
            $region57: #{motion_network_forward.1} parent=51 // pred_check
              _
            $region58: #{motion_network_forward.1} parent=51 // pred_check_branch
              %1704 = sbr.rel target = $region60
            $region59: #{motion_network_forward.1} parent=51 // pred_region
              %s1706 = ssub.s32 256, 1
              %s1707 = sshrl.u32 %s1693, 4
              // While loop
              $region61: #{motion_network_forward.1} parent=59 // loop_pre_header
                _
              $region62: #{motion_network_forward.1} parent=59 // loop_header
                %s1709 = sphi 0, %s1711
                %p1710 = scmp.ge.s32.totalorder %s1709, %s1707
                %s1714 = sphi 0, %s1751
                %s1715 = sphi %s1686, %s1754
                %s1716 = sphi %s1697, %s1755
              $region63: #{motion_network_forward.1} parent=59 // loop_header_branch
                %1713 = sbr.rel (%p1710) target = $region67
              $region64: #{motion_network_forward.1} parent=59 // loop_body
                %v1717 = vld [vmem:[%s1715] sm:%s1706]
                %1718 = vst [vmem:[%s1716] sm:%s1706] %v1717
                %v1719 = vld [vmem:[%s1715 + $0x8] sm:%s1706]
                %1720 = vst [vmem:[%s1716 + $0x8] sm:%s1706] %v1719
                %v1721 = vld [vmem:[%s1715 + $0x10] sm:%s1706]
                %1722 = vst [vmem:[%s1716 + $0x10] sm:%s1706] %v1721
                %v1723 = vld [vmem:[%s1715 + $0x18] sm:%s1706]
                %1724 = vst [vmem:[%s1716 + $0x18] sm:%s1706] %v1723
                %v1725 = vld [vmem:[%s1715 + $0x20] sm:%s1706]
                %1726 = vst [vmem:[%s1716 + $0x20] sm:%s1706] %v1725
                %v1727 = vld [vmem:[%s1715 + $0x28] sm:%s1706]
                %1728 = vst [vmem:[%s1716 + $0x28] sm:%s1706] %v1727
                %v1729 = vld [vmem:[%s1715 + $0x30] sm:%s1706]
                %1730 = vst [vmem:[%s1716 + $0x30] sm:%s1706] %v1729
                %v1731 = vld [vmem:[%s1715 + $0x38] sm:%s1706]
                %1732 = vst [vmem:[%s1716 + $0x38] sm:%s1706] %v1731
                %v1733 = vld [vmem:[%s1715 + $0x40] sm:%s1706]
                %1734 = vst [vmem:[%s1716 + $0x40] sm:%s1706] %v1733
                %v1735 = vld [vmem:[%s1715 + $0x48] sm:%s1706]
                %1736 = vst [vmem:[%s1716 + $0x48] sm:%s1706] %v1735
                %v1737 = vld [vmem:[%s1715 + $0x50] sm:%s1706]
                %1738 = vst [vmem:[%s1716 + $0x50] sm:%s1706] %v1737
                %v1739 = vld [vmem:[%s1715 + $0x58] sm:%s1706]
                %1740 = vst [vmem:[%s1716 + $0x58] sm:%s1706] %v1739
                %v1741 = vld [vmem:[%s1715 + $0x60] sm:%s1706]
                %1742 = vst [vmem:[%s1716 + $0x60] sm:%s1706] %v1741
                %v1743 = vld [vmem:[%s1715 + $0x68] sm:%s1706]
                %1744 = vst [vmem:[%s1716 + $0x68] sm:%s1706] %v1743
                %v1745 = vld [vmem:[%s1715 + $0x70] sm:%s1706]
                %1746 = vst [vmem:[%s1716 + $0x70] sm:%s1706] %v1745
                %v1747 = vld [vmem:[%s1715 + $0x78] sm:%s1706]
                %1748 = vst [vmem:[%s1716 + $0x78] sm:%s1706] %v1747
                %s1749 = sadd.s32 1, %s1714
                %p1750 = scmp.ge.s32.totalorder %s1749, %s1707
                %s1751 = scalar_select %p1750, 0, %s1749
                %s1752 = smul.u32 %s1751, 128
                %s1753 = smul.u32 %s1751, 128
                %s1754 = scalar_lea.vmem %s1686, %s1752 [#allocation2]
                %s1755 = scalar_lea.vmem %s1697, %s1753
              $region65: #{motion_network_forward.1} parent=59 // loop_footer
                %s1711 = sadd.s32 %s1709, 1
              $region66: #{motion_network_forward.1} parent=59 // loop_footer_branch
                %1708 = sbr.rel target = $region62
              $region67: #{motion_network_forward.1} parent=59 // loop_exit
                _
              %s1756 = sshrl.u32 %s1693, 4
              %s1757 = sand.u32 %s1693, 15
              %s1758 = smul.u32 %s1756, 16
              %s1759 = smul.u32 8, %s1758
              %s1760 = scalar_lea.vmem %s1686, %s1759 [#allocation2]
              %s1761 = smul.u32 8, %s1758
              %s1762 = scalar_lea.vmem %s1697, %s1761
              // While loop
              $region68: #{motion_network_forward.1} parent=59 // loop_pre_header
                _
              $region69: #{motion_network_forward.1} parent=59 // loop_header
                %s1764 = sphi 0, %s1766
                %p1765 = scmp.ge.s32.totalorder %s1764, %s1757
                %s1769 = sphi 0, %s1776
                %s1770 = sphi %s1760, %s1779
                %s1771 = sphi %s1762, %s1780
              $region70: #{motion_network_forward.1} parent=59 // loop_header_branch
                %1768 = sbr.rel (%p1765) target = $region74
              $region71: #{motion_network_forward.1} parent=59 // loop_body
                %v1772 = vld [vmem:[%s1770] sm:%s1706]
                %1773 = vst [vmem:[%s1771] sm:%s1706] %v1772
                %s1774 = sadd.s32 1, %s1769
                %p1775 = scmp.ge.s32.totalorder %s1774, %s1757
                %s1776 = scalar_select %p1775, 0, %s1774
                %s1777 = smul.u32 %s1776, 8
                %s1778 = smul.u32 %s1776, 8
                %s1779 = scalar_lea.vmem %s1760, %s1777 [#allocation2]
                %s1780 = scalar_lea.vmem %s1762, %s1778
              $region72: #{motion_network_forward.1} parent=59 // loop_footer
                %s1766 = sadd.s32 %s1764, 1
              $region73: #{motion_network_forward.1} parent=59 // loop_footer_branch
                %1763 = sbr.rel target = $region69
              $region74: #{motion_network_forward.1} parent=59 // loop_exit
                _
            $region60: #{motion_network_forward.1} parent=51 // pred_fallthru
              _
          $region52: #{motion_network_forward.1} parent=47 // pred_fallthru
            _
          %1859 = vnop
        $region48: #{motion_network_forward.1} parent=43 // pred_fallthru
          _
      $region44: #{motion_network_forward.1} parent=5 // pred_fallthru
        _
      %p1860 = scmp.le.s32.totalorder 2, %s12
      // Predicated region
      $region97: #{motion_network_forward.1} parent=5 // pred_check
        %p1861 = pneg %p1860
      $region98: #{motion_network_forward.1} parent=5 // pred_check_branch
        %1863 = sbr.rel (%p1861) target = $region100
      $region99: #{motion_network_forward.1} parent=5 // pred_region
        %s1864 = ssub.s32 %s12, 2
        // Predicated region
        $region101: #{motion_network_forward.1} parent=99 // pred_check
          %p1865 = pneg %p172
        $region102: #{motion_network_forward.1} parent=99 // pred_check_branch
          %1867 = sbr.rel (%p1865) target = $region104
        $region103: #{motion_network_forward.1} parent=99 // pred_region
          %s1868 = sand.u32 %s157, 1
          %s1869 = sand.u32 %s157, 1
          %s1870 = smul.addr %s1869, 128
          %s1871 = scalar_lea.vmem [#allocation2], %s1870
        $region104: #{motion_network_forward.1} parent=99 // pred_fallthru
          _
      $region100: #{motion_network_forward.1} parent=5 // pred_fallthru
        _
    $region6: #{motion_network_forward.1} parent=1 // loop_footer
      %s16 = sadd.s32 1, %s12
    $region7: #{motion_network_forward.1} parent=1 // loop_footer_branch
      %11 = sbr.rel target = $region3
    $region8: #{motion_network_forward.1} parent=1 // loop_exit
      _

</llo_original>
